<compile_context>
chip_gen: v7x
topology: tpu7x:2x2x1
jax: 0.10.0
libtpu: 0.0.40
codegen_flags: <defaults>
</compile_context>

<pallas_src>
import jax
import jax.numpy as jnp
from jax.experimental import pallas as pl
from jax.experimental.pallas import tpu as pltpu

MXU_DTYPE = jnp.bfloat16   # MXU operand dtype for the big matmuls
ACT_DTYPE = jnp.bfloat16   # HBM dtype for intermediate activations (q, k|v, attn)


# ---------------------------------------------------------------------------
# Tiled dense kernel:  y = x @ W (+ b),  W stored as (in, out).
# ---------------------------------------------------------------------------
def _make_dense_kernel(has_bias: bool, use_scratch: bool):
    def kernel(*refs):
        if has_bias and use_scratch:
            x_ref, w_ref, b_ref, o_ref, acc_ref = refs
        elif has_bias:
            x_ref, w_ref, b_ref, o_ref = refs
            acc_ref = o_ref                    # accumulate in the resident f32 block
        elif use_scratch:
            x_ref, w_ref, o_ref, acc_ref = refs
        else:
            x_ref, w_ref, o_ref = refs
            acc_ref = o_ref

        @pl.when(pl.program_id(2) == 0)
        def _init():
            acc_ref[...] = jnp.zeros_like(acc_ref)

        acc_ref[...] += jnp.dot(
            x_ref[...].astype(MXU_DTYPE),
            w_ref[...].astype(MXU_DTYPE),
            preferred_element_type=jnp.float32,
        )

        @pl.when(pl.program_id(2) == pl.num_programs(2) - 1)
        def _finalize():
            res = acc_ref[...]
            if has_bias:
                res = res + b_ref[...]
            if use_scratch or has_bias:
                o_ref[...] = res.astype(o_ref.dtype)

    return kernel


def _pick_tile(dim, candidates):
    """Largest candidate tile that divides `dim`; else the full extent (always legal)."""
    for t in candidates:
        if t <= dim and dim % t == 0:
            return t
    return dim


def dense(x, w, b=None, *, out_dtype=None, tm=512, tn=512, tk=512):
    """y = x @ w (+ b).  x: (M, K), w: (K, Nout), b: (Nout,) or None."""
    M, K = x.shape
    Kw, Nout = w.shape
    assert K == Kw
    out_dtype = x.dtype if out_dtype is None else out_dtype

    # Keep blocks on the unmasked aligned path (bf16 likes sublane multiples of 16).
    pad = (-M) % 16
    if pad:
        x = jnp.pad(x, ((0, pad), (0, 0)))
    Mp = M + pad

    tm = _pick_tile(Mp, (tm, 256, 128, 64, 32, 16))
    tn = _pick_tile(Nout, (tn, 256, 128))
    tk = _pick_tile(K, (tk, 256, 128))
    grid = (Mp // tm, Nout // tn, K // tk)

    has_bias = b is not None
    use_scratch = jnp.dtype(out_dtype) != jnp.dtype("float32")

    in_specs = [
        pl.BlockSpec((tm, tk), lambda i, j, k: (i, k)),
        pl.BlockSpec((tk, tn), lambda i, j, k: (k, j)),
    ]
    args = [x, w]
    if has_bias:
        in_specs.append(pl.BlockSpec((1, tn), lambda i, j, k: (0, j)))
        args.append(b.reshape(1, Nout).astype(jnp.float32))

    scratch_shapes = [pltpu.VMEM((tm, tn), jnp.float32)] if use_scratch else []

    out = pl.pallas_call(
        _make_dense_kernel(has_bias, use_scratch),
        out_shape=jax.ShapeDtypeStruct((Mp, Nout), out_dtype),
        grid=grid,
        in_specs=in_specs,
        out_specs=pl.BlockSpec((tm, tn), lambda i, j, k: (i, j)),
        scratch_shapes=scratch_shapes,
        compiler_params=pltpu.CompilerParams(
            dimension_semantics=("parallel", "parallel", "arbitrary")),
    )(*args)
    return out[:M] if pad else out


# ---------------------------------------------------------------------------
# Linear attention — pass 1: accumulate kv = phi(K)^T V and ksum = sum phi(K).
#   kv_in_ref : (tn, 2C) bf16   columns [0:C] = k (all heads), [C:2C] = v
#   kv_ref    : (D, C)  f32 out (resident across the N axis; head h in cols h*D:(h+1)*D)
#   ksum_ref  : (1, C)  f32 out (resident across the N axis)
# ---------------------------------------------------------------------------
def _make_kv_kernel(H, D):
    C = H * D

    def kernel(kv_in_ref, kv_ref, ksum_ref):
        @pl.when(pl.program_id(1) == 0)
        def _init():
            kv_ref[...] = jnp.zeros_like(kv_ref)
            ksum_ref[...] = jnp.zeros_like(ksum_ref)

        k = kv_in_ref[:, :C].astype(jnp.float32)               # (tn, C)
        phi_k = jnp.where(k > 0, k + 1.0, jnp.exp(k))          # elu(k) + 1
        ksum_ref[...] += jnp.sum(phi_k, axis=0, keepdims=True)

        phi_k_mxu = phi_k.astype(MXU_DTYPE)
        blocks = []
        for h in range(H):                                     # static unroll over heads
            v_h = kv_in_ref[:, C + h * D: C + (h + 1) * D]     # (tn, D) bf16
            # kv_h = phi(K_h)^T V_h : contract the sequence axis directly (no .T op),
            # bf16 MXU operands, f32 accumulation/storage.
            blocks.append(jax.lax.dot_general(
                phi_k_mxu[:, h * D:(h + 1) * D], v_h,
                (((0,), (0,)), ((), ())),
                preferred_element_type=jnp.float32))           # (D, D)
        kv_ref[...] += jnp.concatenate(blocks, axis=-1)        # one full-width update

    return kernel


# ---------------------------------------------------------------------------
# Linear attention — pass 2: out = phi(Q) kv / (phi(Q) . ksum), lane-dense store.
#   q_ref    : (tn, C) bf16
#   kv_ref   : (D, C)  f32
#   ksum_ref : (1, C)  f32
#   o_ref    : (tn, C) bf16   (== attn.transpose(1,2).reshape(B, N, C) layout)
# ---------------------------------------------------------------------------
def _make_attn_out_kernel(H, D, eps=1e-6):
    C = H * D

    def kernel(q_ref, kv_ref, ksum_ref, o_ref):
        q = q_ref[...].astype(jnp.float32)                     # (tn, C)
        phi_q = jnp.where(q > 0, q + 1.0, jnp.exp(q))          # elu(q) + 1
        kv = kv_ref[...]                                       # (D, C) f32
        ksum = ksum_ref[...]                                   # (1, C) f32

        outs = []
        for h in range(H):
            pq_h = phi_q[:, h * D:(h + 1) * D]                 # (tn, D) f32
            kv_h = kv[:, h * D:(h + 1) * D]                    # (D, D)  f32
            # f32 numerator matmul: kv entries are O(N) sums -> keep them f32
            # (bf16-rounding them was flagged as a parity risk).
            num = jnp.dot(pq_h, kv_h, preferred_element_type=jnp.float32)
            den = jnp.sum(pq_h * ksum[:, h * D:(h + 1) * D], axis=-1, keepdims=True)
            outs.append(num / (den + eps))                     # exact divide (parity)
        # Single lane-dense (tn, C) store per tile — no per-head 64-lane stripes.
        o_ref[...] = jnp.concatenate(outs, axis=-1).astype(o_ref.dtype)

    return kernel


def linear_attention(q, kv, num_heads):
    """q: (B, N, C);  kv: (B, N, 2C) with columns [k | v].  Returns attn (B, N, C)."""
    B, N, C = q.shape
    assert kv.shape == (B, N, 2 * C)
    assert C % num_heads == 0
    H = num_heads
    D = C // H

    tn = _pick_tile(N, (512, 256, 128, 64, 32, 16))
    grid = (B, N // tn)

    # Pass 1: per-batch kv (D, C) and ksum (1, C), accumulated over N tiles.
    kv_stats, ksum = pl.pallas_call(
        _make_kv_kernel(H, D),
        out_shape=(jax.ShapeDtypeStruct((B, D, C), jnp.float32),
                   jax.ShapeDtypeStruct((B, 1, C), jnp.float32)),
        grid=grid,
        in_specs=[pl.BlockSpec((None, tn, 2 * C), lambda b, n: (b, n, 0))],
        out_specs=(pl.BlockSpec((None, D, C), lambda b, n: (b, 0, 0)),
                   pl.BlockSpec((None, 1, C), lambda b, n: (b, 0, 0))),
        compiler_params=pltpu.CompilerParams(
            dimension_semantics=("parallel", "arbitrary")),
    )(kv)

    # Pass 2: per (batch, q-tile) output; both axes parallel (v7x dual-TC sharding).
    # TODO(synk): if the per-tile DMA stays exposed, sweep pipeline_mode=pl.Buffered(3)
    # on the q input spec.
    attn = pl.pallas_call(
        _make_attn_out_kernel(H, D),
        out_shape=jax.ShapeDtypeStruct((B, N, C), ACT_DTYPE),
        grid=grid,
        in_specs=[pl.BlockSpec((None, tn, C), lambda b, n: (b, n, 0)),
                  pl.BlockSpec((None, D, C), lambda b, n: (b, 0, 0)),
                  pl.BlockSpec((None, 1, C), lambda b, n: (b, 0, 0))],
        out_specs=pl.BlockSpec((None, tn, C), lambda b, n: (b, n, 0)),
        compiler_params=pltpu.CompilerParams(
            dimension_semantics=("parallel", "parallel")),
    )(q, kv_stats, ksum)
    return attn


# ---------------------------------------------------------------------------
# Full module forward (all heavy lifting in Pallas; only free reshapes outside).
# ---------------------------------------------------------------------------
def init_params(key, dim):
    k1, k2, k3, k4 = jax.random.split(key, 4)
    # qkv Linear (bias=False), stored as (in, out) and pre-split into the q and
    # [k | v] column groups so each attention pass reads one contiguous stream.
    # Weights are stored bf16 (MXU operand dtype); bias stays f32.
    return {
        "wq": (0.02 * jax.random.normal(k1, (dim, dim), jnp.float32)).astype(MXU_DTYPE),
        "wkv": (0.02 * jax.random.normal(k2, (dim, 2 * dim), jnp.float32)).astype(MXU_DTYPE),
        "proj_w": (0.02 * jax.random.normal(k3, (dim, dim), jnp.float32)).astype(MXU_DTYPE),
        "proj_b": 0.01 * jax.random.normal(k4, (dim,), jnp.float32),
    }


def linear_attention_module(x, params, num_heads):
    B, N, C = x.shape
    assert C % num_heads == 0
    x2d = x.reshape(B * N, C)

    # qkv projection as two tiled Pallas matmuls, bf16 HBM intermediates.
    q = dense(x2d, params["wq"], None, out_dtype=ACT_DTYPE).reshape(B, N, C)
    kv = dense(x2d, params["wkv"], None, out_dtype=ACT_DTYPE).reshape(B, N, 2 * C)

    # Non-causal linear attention; output already in (B, N, C) channel-concat layout.
    attn = linear_attention(q, kv, num_heads)

    # Output projection back to f32 (attn_drop / proj_drop are identity in eval mode).
    out = dense(attn.reshape(B * N, C), params["proj_w"], params["proj_b"],
                out_dtype=jnp.float32)
    return out.reshape(B, N, C)


# ---------------------------------------------------------------------------
# Pure-JAX reference (f32) for a sanity check.
# ---------------------------------------------------------------------------
def _reference(x, params, num_heads, eps=1e-6):
    B, N, C = x.shape
    H, D = num_heads, C // num_heads
    wq = params["wq"].astype(jnp.float32)
    wkv = params["wkv"].astype(jnp.float32)
    q = (x @ wq).reshape(B, N, H, D)
    k = (x @ wkv[:, :C]).reshape(B, N, H, D)
    v = (x @ wkv[:, C:]).reshape(B, N, H, D)
    phi = lambda t: jnp.where(t > 0, t + 1.0, jnp.exp(t))
    pq, pk = phi(q), phi(k)
    kv = jnp.einsum("bnhd,bnhe->bhde", pk, v)
    ksum = jnp.sum(pk, axis=1)                              # (B, H, D)
    num = jnp.einsum("bnhd,bhde->bnhe", pq, kv)
    den = jnp.einsum("bnhd,bhd->bnh", pq, ksum)[..., None]
    o = (num / (den + eps)).reshape(B, N, C)
    return o @ params["proj_w"].astype(jnp.float32) + params["proj_b"]


if __name__ == "__main__":
    B, N, C, H = 2, 16, 32, 4
    key = jax.random.PRNGKey(0)
    kx, kp = jax.random.split(key)

    x = jax.random.normal(kx, (B, N, C), jnp.float32)
    params = init_params(kp, C)

    fwd = jax.jit(linear_attention_module, static_argnums=(2,))
    y = jax.block_until_ready(fwd(x, params, H))

    assert y.shape == (B, N, C), y.shape
    assert bool(jnp.all(jnp.isfinite(y)))

    y_ref = _reference(x, params, H)
    err = float(jnp.max(jnp.abs(y - y_ref)))
    assert err < 1e-2, f"max abs err vs reference: {err}"
    print("KERNEL_OK")
</pallas_src>

<mosaic_0001>
module attributes {stable_mosaic.version = 11 : i64} {
  func.func @kernel(%arg0: i32, %arg1: i32, %arg2: i32, %arg3: memref<32x32xf32, #tpu.memory_space<vmem>>, %arg4: memref<32x32xbf16, #tpu.memory_space<vmem>>, %arg5: memref<32x32xbf16, #tpu.memory_space<vmem>>, %arg6: memref<32x32xf32, #tpu.memory_space<vmem>>) attributes {dimension_semantics = [#tpu.dimension_semantics<parallel>, #tpu.dimension_semantics<parallel>, #tpu.dimension_semantics<arbitrary>], iteration_bounds = array<i64: 1, 1, 1>, scalar_prefetch = 0 : i64, scratch_operands = 1 : i64, tpu.core_type = #tpu.core_type<tc>, window_params = [{transform_indices = @transform_0, window_bounds = array<i64: 32, 32>}, {transform_indices = @transform_1, window_bounds = array<i64: 32, 32>}, {transform_indices = @transform_2, window_bounds = array<i64: 32, 32>}]} {
    %c0_i32 = arith.constant 0 : i32
    %0 = arith.cmpi eq, %arg2, %c0_i32 : i32
    %1 = arith.extui %0 : i1 to i32
    %c0_i32_0 = arith.constant 0 : i32
    %2 = arith.cmpi ne, %1, %c0_i32_0 : i32
    scf.if %2 {
      %cst_10 = arith.constant 0.000000e+00 : f32
      %13 = vector.broadcast %cst_10 : f32 to vector<32x32xf32>
      %c0_11 = arith.constant 0 : index
      %c0_12 = arith.constant 0 : index
      %14 = vector.load %arg6[%c0_11, %c0_12] : memref<32x32xf32, #tpu.memory_space<vmem>>, vector<32x32xf32>
      tpu.vector_store %arg6[%c0_11, %c0_12], %13 {strides = array<i32>} : memref<32x32xf32, #tpu.memory_space<vmem>>, vector<32x32xf32>,
    } else {
    }
    %c0 = arith.constant 0 : index
    %c0_1 = arith.constant 0 : index
    %3 = vector.load %arg6[%c0, %c0_1] : memref<32x32xf32, #tpu.memory_space<vmem>>, vector<32x32xf32>
    %c0_2 = arith.constant 0 : index
    %c0_3 = arith.constant 0 : index
    %4 = vector.load %arg3[%c0_2, %c0_3] : memref<32x32xf32, #tpu.memory_space<vmem>>, vector<32x32xf32>
    %5 = arith.truncf %4 : vector<32x32xf32> to vector<32x32xbf16>
    %c0_4 = arith.constant 0 : index
    %c0_5 = arith.constant 0 : index
    %6 = vector.load %arg4[%c0_4, %c0_5] : memref<32x32xbf16, #tpu.memory_space<vmem>>, vector<32x32xbf16>
    %cst = arith.constant dense<0.000000e+00> : vector<32x32xf32>
    %7 = tpu.matmul %5, %6, %cst {dimension_numbers = #tpu.dot_dimension_numbers<[1], [0], [0], [1], [0, 0, 1, 1], [], []>} : vector<32x32xbf16>, vector<32x32xbf16>, vector<32x32xf32> -> vector<32x32xf32>
    %8 = arith.addf %3, %7 : vector<32x32xf32>
    %c0_6 = arith.constant 0 : index
    %c0_7 = arith.constant 0 : index
    %9 = vector.load %arg6[%c0_6, %c0_7] : memref<32x32xf32, #tpu.memory_space<vmem>>, vector<32x32xf32>
    tpu.vector_store %arg6[%c0_6, %c0_7], %8 {strides = array<i32>} : memref<32x32xf32, #tpu.memory_space<vmem>>, vector<32x32xf32>,
    %c0_i32_8 = arith.constant 0 : i32
    %10 = arith.cmpi eq, %arg2, %c0_i32_8 : i32
    %11 = arith.extui %10 : i1 to i32
    %c0_i32_9 = arith.constant 0 : i32
    %12 = arith.cmpi ne, %11, %c0_i32_9 : i32
    scf.if %12 {
      %c0_10 = arith.constant 0 : index
      %c0_11 = arith.constant 0 : index
      %13 = vector.load %arg6[%c0_10, %c0_11] : memref<32x32xf32, #tpu.memory_space<vmem>>, vector<32x32xf32>
      %14 = arith.truncf %13 : vector<32x32xf32> to vector<32x32xbf16>
      %c0_12 = arith.constant 0 : index
      %c0_13 = arith.constant 0 : index
      %15 = vector.load %arg5[%c0_12, %c0_13] : memref<32x32xbf16, #tpu.memory_space<vmem>>, vector<32x32xbf16>
      tpu.vector_store %arg5[%c0_12, %c0_13], %14 {strides = array<i32>} : memref<32x32xbf16, #tpu.memory_space<vmem>>, vector<32x32xbf16>,
    } else {
    }
    return
  }
  func.func @transform_0(%arg0: i32, %arg1: i32, %arg2: i32) -> (i32, i32) {
    %c0_i32 = arith.constant 0 : i32
    return %arg0, %arg2 : i32, i32
  }
  func.func @transform_1(%arg0: i32, %arg1: i32, %arg2: i32) -> (i32, i32) {
    %c0_i32 = arith.constant 0 : i32
    return %arg2, %arg1 : i32, i32
  }
  func.func @transform_2(%arg0: i32, %arg1: i32, %arg2: i32) -> (i32, i32) {
    %c0_i32 = arith.constant 0 : i32
    return %arg0, %arg1 : i32, i32
  }
}

module attributes {stable_mosaic.version = 11 : i64} {
  func.func @kernel(%arg0: i32, %arg1: i32, %arg2: i32, %arg3: memref<32x32xf32, #tpu.memory_space<vmem>>, %arg4: memref<32x64xbf16, #tpu.memory_space<vmem>>, %arg5: memref<32x64xbf16, #tpu.memory_space<vmem>>, %arg6: memref<32x64xf32, #tpu.memory_space<vmem>>) attributes {dimension_semantics = [#tpu.dimension_semantics<parallel>, #tpu.dimension_semantics<parallel>, #tpu.dimension_semantics<arbitrary>], iteration_bounds = array<i64: 1, 1, 1>, scalar_prefetch = 0 : i64, scratch_operands = 1 : i64, tpu.core_type = #tpu.core_type<tc>, window_params = [{transform_indices = @transform_0, window_bounds = array<i64: 32, 32>}, {transform_indices = @transform_1, window_bounds = array<i64: 32, 64>}, {transform_indices = @transform_2, window_bounds = array<i64: 32, 64>}]} {
    %c0_i32 = arith.constant 0 : i32
    %0 = arith.cmpi eq, %arg2, %c0_i32 : i32
    %1 = arith.extui %0 : i1 to i32
    %c0_i32_0 = arith.constant 0 : i32
    %2 = arith.cmpi ne, %1, %c0_i32_0 : i32
    scf.if %2 {
      %cst_10 = arith.constant 0.000000e+00 : f32
      %13 = vector.broadcast %cst_10 : f32 to vector<32x64xf32>
      %c0_11 = arith.constant 0 : index
      %c0_12 = arith.constant 0 : index
      %14 = vector.load %arg6[%c0_11, %c0_12] : memref<32x64xf32, #tpu.memory_space<vmem>>, vector<32x64xf32>
      tpu.vector_store %arg6[%c0_11, %c0_12], %13 {strides = array<i32>} : memref<32x64xf32, #tpu.memory_space<vmem>>, vector<32x64xf32>,
    } else {
    }
    %c0 = arith.constant 0 : index
    %c0_1 = arith.constant 0 : index
    %3 = vector.load %arg6[%c0, %c0_1] : memref<32x64xf32, #tpu.memory_space<vmem>>, vector<32x64xf32>
    %c0_2 = arith.constant 0 : index
    %c0_3 = arith.constant 0 : index
    %4 = vector.load %arg3[%c0_2, %c0_3] : memref<32x32xf32, #tpu.memory_space<vmem>>, vector<32x32xf32>
    %5 = arith.truncf %4 : vector<32x32xf32> to vector<32x32xbf16>
    %c0_4 = arith.constant 0 : index
    %c0_5 = arith.constant 0 : index
    %6 = vector.load %arg4[%c0_4, %c0_5] : memref<32x64xbf16, #tpu.memory_space<vmem>>, vector<32x64xbf16>
    %cst = arith.constant dense<0.000000e+00> : vector<32x64xf32>
    %7 = tpu.matmul %5, %6, %cst {dimension_numbers = #tpu.dot_dimension_numbers<[1], [0], [0], [1], [0, 0, 1, 1], [], []>} : vector<32x32xbf16>, vector<32x64xbf16>, vector<32x64xf32> -> vector<32x64xf32>
    %8 = arith.addf %3, %7 : vector<32x64xf32>
    %c0_6 = arith.constant 0 : index
    %c0_7 = arith.constant 0 : index
    %9 = vector.load %arg6[%c0_6, %c0_7] : memref<32x64xf32, #tpu.memory_space<vmem>>, vector<32x64xf32>
    tpu.vector_store %arg6[%c0_6, %c0_7], %8 {strides = array<i32>} : memref<32x64xf32, #tpu.memory_space<vmem>>, vector<32x64xf32>,
    %c0_i32_8 = arith.constant 0 : i32
    %10 = arith.cmpi eq, %arg2, %c0_i32_8 : i32
    %11 = arith.extui %10 : i1 to i32
    %c0_i32_9 = arith.constant 0 : i32
    %12 = arith.cmpi ne, %11, %c0_i32_9 : i32
    scf.if %12 {
      %c0_10 = arith.constant 0 : index
      %c0_11 = arith.constant 0 : index
      %13 = vector.load %arg6[%c0_10, %c0_11] : memref<32x64xf32, #tpu.memory_space<vmem>>, vector<32x64xf32>
      %14 = arith.truncf %13 : vector<32x64xf32> to vector<32x64xbf16>
      %c0_12 = arith.constant 0 : index
      %c0_13 = arith.constant 0 : index
      %15 = vector.load %arg5[%c0_12, %c0_13] : memref<32x64xbf16, #tpu.memory_space<vmem>>, vector<32x64xbf16>
      tpu.vector_store %arg5[%c0_12, %c0_13], %14 {strides = array<i32>} : memref<32x64xbf16, #tpu.memory_space<vmem>>, vector<32x64xbf16>,
    } else {
    }
    return
  }
  func.func @transform_0(%arg0: i32, %arg1: i32, %arg2: i32) -> (i32, i32) {
    %c0_i32 = arith.constant 0 : i32
    return %arg0, %arg2 : i32, i32
  }
  func.func @transform_1(%arg0: i32, %arg1: i32, %arg2: i32) -> (i32, i32) {
    %c0_i32 = arith.constant 0 : i32
    return %arg2, %arg1 : i32, i32
  }
  func.func @transform_2(%arg0: i32, %arg1: i32, %arg2: i32) -> (i32, i32) {
    %c0_i32 = arith.constant 0 : i32
    return %arg0, %arg1 : i32, i32
  }
}

module attributes {stable_mosaic.version = 11 : i64} {
  func.func @kernel(%arg0: i32, %arg1: i32, %arg2: memref<1x16x64xbf16, #tpu.memory_space<vmem>>, %arg3: memref<1x8x32xf32, #tpu.memory_space<vmem>>, %arg4: memref<1x1x32xf32, #tpu.memory_space<vmem>>) attributes {dimension_semantics = [#tpu.dimension_semantics<parallel>, #tpu.dimension_semantics<arbitrary>], iteration_bounds = array<i64: 2, 1>, scalar_prefetch = 0 : i64, scratch_operands = 0 : i64, tpu.core_type = #tpu.core_type<tc>, window_params = [{transform_indices = @transform_0, window_bounds = array<i64: 1, 16, 64>}, {transform_indices = @transform_1, window_bounds = array<i64: 1, 8, 32>}, {transform_indices = @transform_2, window_bounds = array<i64: 1, 1, 32>}]} {
    %c0_i32 = arith.constant 0 : i32
    %0 = arith.cmpi eq, %arg1, %c0_i32 : i32
    %1 = arith.extui %0 : i1 to i32
    %c0_i32_0 = arith.constant 0 : i32
    %2 = arith.cmpi ne, %1, %c0_i32_0 : i32
    scf.if %2 {
      %cst_29 = arith.constant 0.000000e+00 : f32
      %44 = vector.broadcast %cst_29 : f32 to vector<8x32xf32>
      %c0_30 = arith.constant 0 : index
      %c0_31 = arith.constant 0 : index
      %c0_32 = arith.constant 0 : index
      %45 = vector.load %arg3[%c0_30, %c0_31, %c0_32] : memref<1x8x32xf32, #tpu.memory_space<vmem>>, vector<1x8x32xf32>
      %46 = vector.shape_cast %45 : vector<1x8x32xf32> to vector<8x32xf32>
      %47 = vector.shape_cast %44 : vector<8x32xf32> to vector<1x8x32xf32>
      tpu.vector_store %arg3[%c0_30, %c0_31, %c0_32], %47 {strides = array<i32>} : memref<1x8x32xf32, #tpu.memory_space<vmem>>, vector<1x8x32xf32>,
      %cst_33 = arith.constant 0.000000e+00 : f32
      %48 = vector.broadcast %cst_33 : f32 to vector<1x32xf32>
      %c0_34 = arith.constant 0 : index
      %c0_35 = arith.constant 0 : index
      %c0_36 = arith.constant 0 : index
      %49 = vector.load %arg4[%c0_34, %c0_35, %c0_36] : memref<1x1x32xf32, #tpu.memory_space<vmem>>, vector<1x1x32xf32>
      %50 = vector.shape_cast %49 : vector<1x1x32xf32> to vector<1x32xf32>
      %51 = vector.shape_cast %48 : vector<1x32xf32> to vector<1x1x32xf32>
      tpu.vector_store %arg4[%c0_34, %c0_35, %c0_36], %51 {strides = array<i32>} : memref<1x1x32xf32, #tpu.memory_space<vmem>>, vector<1x1x32xf32>,
    } else {
    }
    %c0 = arith.constant 0 : index
    %c0_1 = arith.constant 0 : index
    %c0_2 = arith.constant 0 : index
    %3 = vector.load %arg2[%c0, %c0_1, %c0_2] : memref<1x16x64xbf16, #tpu.memory_space<vmem>>, vector<1x16x32xbf16>
    %4 = vector.shape_cast %3 : vector<1x16x32xbf16> to vector<16x32xbf16>
    %5 = arith.extf %4 : vector<16x32xbf16> to vector<16x32xf32>
    %cst = arith.constant 0.000000e+00 : f32
    %6 = vector.broadcast %cst : f32 to vector<16x32xf32>
    %7 = arith.cmpf ogt, %5, %6 : vector<16x32xf32>
    %cst_3 = arith.constant 1.000000e+00 : f32
    %8 = vector.broadcast %cst_3 : f32 to vector<16x32xf32>
    %9 = arith.addf %5, %8 : vector<16x32xf32>
    %10 = math.exp %5 : vector<16x32xf32>
    %11 = arith.select %7, %9, %10 : vector<16x32xi1>, vector<16x32xf32>
    %c0_4 = arith.constant 0 : index
    %c0_5 = arith.constant 0 : index
    %c0_6 = arith.constant 0 : index
    %12 = vector.load %arg4[%c0_4, %c0_5, %c0_6] : memref<1x1x32xf32, #tpu.memory_space<vmem>>, vector<1x1x32xf32>
    %13 = vector.shape_cast %12 : vector<1x1x32xf32> to vector<1x32xf32>
    %cst_7 = arith.constant dense<0.000000e+00> : vector<32xf32>
    %14 = vector.multi_reduction <add>, %11, %cst_7 [0] : vector<16x32xf32> to vector<32xf32>
    %15 = vector.shape_cast %14 : vector<32xf32> to vector<1x32xf32>
    %16 = arith.addf %13, %15 : vector<1x32xf32>
    %c0_8 = arith.constant 0 : index
    %c0_9 = arith.constant 0 : index
    %c0_10 = arith.constant 0 : index
    %17 = vector.load %arg4[%c0_8, %c0_9, %c0_10] : memref<1x1x32xf32, #tpu.memory_space<vmem>>, vector<1x1x32xf32>
    %18 = vector.shape_cast %17 : vector<1x1x32xf32> to vector<1x32xf32>
    %19 = vector.shape_cast %16 : vector<1x32xf32> to vector<1x1x32xf32>
    tpu.vector_store %arg4[%c0_8, %c0_9, %c0_10], %19 {strides = array<i32>} : memref<1x1x32xf32, #tpu.memory_space<vmem>>, vector<1x1x32xf32>,
    %20 = arith.truncf %11 : vector<16x32xf32> to vector<16x32xbf16>
    %c0_11 = arith.constant 0 : index
    %c0_12 = arith.constant 0 : index
    %c32 = arith.constant 32 : index
    %21 = vector.load %arg2[%c0_11, %c0_12, %c32] : memref<1x16x64xbf16, #tpu.memory_space<vmem>>, vector<1x16x8xbf16>
    %22 = vector.shape_cast %21 : vector<1x16x8xbf16> to vector<16x8xbf16>
    %23 = vector.extract_strided_slice %20 {offsets = [0, 0], sizes = [16, 8], strides = [1, 1]} : vector<16x32xbf16> to vector<16x8xbf16>
    %cst_13 = arith.constant dense<0.000000e+00> : vector<8x8xf32>
    %24 = tpu.matmul %23, %22, %cst_13 {dimension_numbers = #tpu.dot_dimension_numbers<[0], [0], [1], [1], [0, 1, 1, 1], [], []>} : vector<16x8xbf16>, vector<16x8xbf16>, vector<8x8xf32> -> vector<8x8xf32>
    %c0_14 = arith.constant 0 : index
    %c0_15 = arith.constant 0 : index
    %c40 = arith.constant 40 : index
    %25 = vector.load %arg2[%c0_14, %c0_15, %c40] : memref<1x16x64xbf16, #tpu.memory_space<vmem>>, vector<1x16x8xbf16>
    %26 = vector.shape_cast %25 : vector<1x16x8xbf16> to vector<16x8xbf16>
    %27 = vector.extract_strided_slice %20 {offsets = [0, 8], sizes = [16, 8], strides = [1, 1]} : vector<16x32xbf16> to vector<16x8xbf16>
    %cst_16 = arith.constant dense<0.000000e+00> : vector<8x8xf32>
    %28 = tpu.matmul %27, %26, %cst_16 {dimension_numbers = #tpu.dot_dimension_numbers<[0], [0], [1], [1], [0, 1, 1, 1], [], []>} : vector<16x8xbf16>, vector<16x8xbf16>, vector<8x8xf32> -> vector<8x8xf32>
    %c0_17 = arith.constant 0 : index
    %c0_18 = arith.constant 0 : index
    %c48 = arith.constant 48 : index
    %29 = vector.load %arg2[%c0_17, %c0_18, %c48] : memref<1x16x64xbf16, #tpu.memory_space<vmem>>, vector<1x16x8xbf16>
    %30 = vector.shape_cast %29 : vector<1x16x8xbf16> to vector<16x8xbf16>
    %31 = vector.extract_strided_slice %20 {offsets = [0, 16], sizes = [16, 8], strides = [1, 1]} : vector<16x32xbf16> to vector<16x8xbf16>
    %cst_19 = arith.constant dense<0.000000e+00> : vector<8x8xf32>
    %32 = tpu.matmul %31, %30, %cst_19 {dimension_numbers = #tpu.dot_dimension_numbers<[0], [0], [1], [1], [0, 1, 1, 1], [], []>} : vector<16x8xbf16>, vector<16x8xbf16>, vector<8x8xf32> -> vector<8x8xf32>
    %c0_20 = arith.constant 0 : index
    %c0_21 = arith.constant 0 : index
    %c56 = arith.constant 56 : index
    %33 = vector.load %arg2[%c0_20, %c0_21, %c56] : memref<1x16x64xbf16, #tpu.memory_space<vmem>>, vector<1x16x8xbf16>
    %34 = vector.shape_cast %33 : vector<1x16x8xbf16> to vector<16x8xbf16>
    %35 = vector.extract_strided_slice %20 {offsets = [0, 24], sizes = [16, 8], strides = [1, 1]} : vector<16x32xbf16> to vector<16x8xbf16>
    %cst_22 = arith.constant dense<0.000000e+00> : vector<8x8xf32>
    %36 = tpu.matmul %35, %34, %cst_22 {dimension_numbers = #tpu.dot_dimension_numbers<[0], [0], [1], [1], [0, 1, 1, 1], [], []>} : vector<16x8xbf16>, vector<16x8xbf16>, vector<8x8xf32> -> vector<8x8xf32>
    %c0_23 = arith.constant 0 : index
    %c0_24 = arith.constant 0 : index
    %c0_25 = arith.constant 0 : index
    %37 = vector.load %arg3[%c0_23, %c0_24, %c0_25] : memref<1x8x32xf32, #tpu.memory_space<vmem>>, vector<1x8x32xf32>
    %38 = vector.shape_cast %37 : vector<1x8x32xf32> to vector<8x32xf32>
    %39 = tpu.concatenate %24, %28, %32, %36 in 1 : vector<8x8xf32>, vector<8x8xf32>, vector<8x8xf32>, vector<8x8xf32> -> vector<8x32xf32>
    %40 = arith.addf %38, %39 : vector<8x32xf32>
    %c0_26 = arith.constant 0 : index
    %c0_27 = arith.constant 0 : index
    %c0_28 = arith.constant 0 : index
    %41 = vector.load %arg3[%c0_26, %c0_27, %c0_28] : memref<1x8x32xf32, #tpu.memory_space<vmem>>, vector<1x8x32xf32>
    %42 = vector.shape_cast %41 : vector<1x8x32xf32> to vector<8x32xf32>
    %43 = vector.shape_cast %40 : vector<8x32xf32> to vector<1x8x32xf32>
    tpu.vector_store %arg3[%c0_26, %c0_27, %c0_28], %43 {strides = array<i32>} : memref<1x8x32xf32, #tpu.memory_space<vmem>>, vector<1x8x32xf32>,
    return
  }
  func.func @transform_0(%arg0: i32, %arg1: i32) -> (i32, i32, i32) {
    %c0_i32 = arith.constant 0 : i32
    %c0_i32_0 = arith.constant 0 : i32
    return %arg0, %arg1, %c0_i32 : i32, i32, i32
  }
  func.func @transform_1(%arg0: i32, %arg1: i32) -> (i32, i32, i32) {
    %c0_i32 = arith.constant 0 : i32
    %c0_i32_0 = arith.constant 0 : i32
    %c0_i32_1 = arith.constant 0 : i32
    return %arg0, %c0_i32, %c0_i32_0 : i32, i32, i32
  }
  func.func @transform_2(%arg0: i32, %arg1: i32) -> (i32, i32, i32) {
    %c0_i32 = arith.constant 0 : i32
    %c0_i32_0 = arith.constant 0 : i32
    %c0_i32_1 = arith.constant 0 : i32
    return %arg0, %c0_i32, %c0_i32_0 : i32, i32, i32
  }
}

module attributes {stable_mosaic.version = 11 : i64} {
  func.func @kernel(%arg0: i32, %arg1: i32, %arg2: memref<1x16x32xbf16, #tpu.memory_space<vmem>>, %arg3: memref<1x8x32xf32, #tpu.memory_space<vmem>>, %arg4: memref<1x1x32xf32, #tpu.memory_space<vmem>>, %arg5: memref<1x16x32xbf16, #tpu.memory_space<vmem>>) attributes {dimension_semantics = [#tpu.dimension_semantics<parallel>, #tpu.dimension_semantics<parallel>], iteration_bounds = array<i64: 2, 1>, scalar_prefetch = 0 : i64, scratch_operands = 0 : i64, tpu.core_type = #tpu.core_type<tc>, window_params = [{transform_indices = @transform_0, window_bounds = array<i64: 1, 16, 32>}, {transform_indices = @transform_1, window_bounds = array<i64: 1, 8, 32>}, {transform_indices = @transform_2, window_bounds = array<i64: 1, 1, 32>}, {transform_indices = @transform_3, window_bounds = array<i64: 1, 16, 32>}]} {
    %c0 = arith.constant 0 : index
    %c0_0 = arith.constant 0 : index
    %c0_1 = arith.constant 0 : index
    %0 = vector.load %arg2[%c0, %c0_0, %c0_1] : memref<1x16x32xbf16, #tpu.memory_space<vmem>>, vector<1x16x32xbf16>
    %1 = vector.shape_cast %0 : vector<1x16x32xbf16> to vector<16x32xbf16>
    %2 = arith.extf %1 : vector<16x32xbf16> to vector<16x32xf32>
    %cst = arith.constant 0.000000e+00 : f32
    %3 = vector.broadcast %cst : f32 to vector<16x32xf32>
    %4 = arith.cmpf ogt, %2, %3 : vector<16x32xf32>
    %cst_2 = arith.constant 1.000000e+00 : f32
    %5 = vector.broadcast %cst_2 : f32 to vector<16x32xf32>
    %6 = arith.addf %2, %5 : vector<16x32xf32>
    %7 = math.exp %2 : vector<16x32xf32>
    %8 = arith.select %4, %6, %7 : vector<16x32xi1>, vector<16x32xf32>
    %c0_3 = arith.constant 0 : index
    %c0_4 = arith.constant 0 : index
    %c0_5 = arith.constant 0 : index
    %9 = vector.load %arg3[%c0_3, %c0_4, %c0_5] : memref<1x8x32xf32, #tpu.memory_space<vmem>>, vector<1x8x32xf32>
    %10 = vector.shape_cast %9 : vector<1x8x32xf32> to vector<8x32xf32>
    %c0_6 = arith.constant 0 : index
    %c0_7 = arith.constant 0 : index
    %c0_8 = arith.constant 0 : index
    %11 = vector.load %arg4[%c0_6, %c0_7, %c0_8] : memref<1x1x32xf32, #tpu.memory_space<vmem>>, vector<1x1x32xf32>
    %12 = vector.shape_cast %11 : vector<1x1x32xf32> to vector<1x32xf32>
    %13 = vector.extract_strided_slice %8 {offsets = [0, 0], sizes = [16, 8], strides = [1, 1]} : vector<16x32xf32> to vector<16x8xf32>
    %14 = vector.extract_strided_slice %10 {offsets = [0, 0], sizes = [8, 8], strides = [1, 1]} : vector<8x32xf32> to vector<8x8xf32>
    %cst_9 = arith.constant dense<0.000000e+00> : vector<16x8xf32>
    %15 = tpu.matmul %13, %14, %cst_9 {dimension_numbers = #tpu.dot_dimension_numbers<[1], [0], [0], [1], [0, 0, 1, 1], [], []>} : vector<16x8xf32>, vector<8x8xf32>, vector<16x8xf32> -> vector<16x8xf32>
    %16 = vector.extract_strided_slice %12 {offsets = [0, 0], sizes = [1, 8], strides = [1, 1]} : vector<1x32xf32> to vector<1x8xf32>
    %17 = vector.broadcast %16 : vector<1x8xf32> to vector<16x8xf32>
    %18 = arith.mulf %13, %17 : vector<16x8xf32>
    %cst_10 = arith.constant dense<0.000000e+00> : vector<16xf32>
    %19 = vector.multi_reduction <add>, %18, %cst_10 [1] : vector<16x8xf32> to vector<16xf32>
    %20 = vector.shape_cast %19 : vector<16xf32> to vector<16x1xf32>
    %cst_11 = arith.constant 9.99999997E-7 : f32
    %21 = vector.broadcast %cst_11 : f32 to vector<16x1xf32>
    %22 = arith.addf %20, %21 : vector<16x1xf32>
    %23 = vector.broadcast %22 : vector<16x1xf32> to vector<16x8xf32>
    %24 = arith.divf %15, %23 : vector<16x8xf32>
    %25 = vector.extract_strided_slice %8 {offsets = [0, 8], sizes = [16, 8], strides = [1, 1]} : vector<16x32xf32> to vector<16x8xf32>
    %26 = vector.extract_strided_slice %10 {offsets = [0, 8], sizes = [8, 8], strides = [1, 1]} : vector<8x32xf32> to vector<8x8xf32>
    %cst_12 = arith.constant dense<0.000000e+00> : vector<16x8xf32>
    %27 = tpu.matmul %25, %26, %cst_12 {dimension_numbers = #tpu.dot_dimension_numbers<[1], [0], [0], [1], [0, 0, 1, 1], [], []>} : vector<16x8xf32>, vector<8x8xf32>, vector<16x8xf32> -> vector<16x8xf32>
    %28 = vector.extract_strided_slice %12 {offsets = [0, 8], sizes = [1, 8], strides = [1, 1]} : vector<1x32xf32> to vector<1x8xf32>
    %29 = vector.broadcast %28 : vector<1x8xf32> to vector<16x8xf32>
    %30 = arith.mulf %25, %29 : vector<16x8xf32>
    %cst_13 = arith.constant dense<0.000000e+00> : vector<16xf32>
    %31 = vector.multi_reduction <add>, %30, %cst_13 [1] : vector<16x8xf32> to vector<16xf32>
    %32 = vector.shape_cast %31 : vector<16xf32> to vector<16x1xf32>
    %cst_14 = arith.constant 9.99999997E-7 : f32
    %33 = vector.broadcast %cst_14 : f32 to vector<16x1xf32>
    %34 = arith.addf %32, %33 : vector<16x1xf32>
    %35 = vector.broadcast %34 : vector<16x1xf32> to vector<16x8xf32>
    %36 = arith.divf %27, %35 : vector<16x8xf32>
    %37 = vector.extract_strided_slice %8 {offsets = [0, 16], sizes = [16, 8], strides = [1, 1]} : vector<16x32xf32> to vector<16x8xf32>
    %38 = vector.extract_strided_slice %10 {offsets = [0, 16], sizes = [8, 8], strides = [1, 1]} : vector<8x32xf32> to vector<8x8xf32>
    %cst_15 = arith.constant dense<0.000000e+00> : vector<16x8xf32>
    %39 = tpu.matmul %37, %38, %cst_15 {dimension_numbers = #tpu.dot_dimension_numbers<[1], [0], [0], [1], [0, 0, 1, 1], [], []>} : vector<16x8xf32>, vector<8x8xf32>, vector<16x8xf32> -> vector<16x8xf32>
    %40 = vector.extract_strided_slice %12 {offsets = [0, 16], sizes = [1, 8], strides = [1, 1]} : vector<1x32xf32> to vector<1x8xf32>
    %41 = vector.broadcast %40 : vector<1x8xf32> to vector<16x8xf32>
    %42 = arith.mulf %37, %41 : vector<16x8xf32>
    %cst_16 = arith.constant dense<0.000000e+00> : vector<16xf32>
    %43 = vector.multi_reduction <add>, %42, %cst_16 [1] : vector<16x8xf32> to vector<16xf32>
    %44 = vector.shape_cast %43 : vector<16xf32> to vector<16x1xf32>
    %cst_17 = arith.constant 9.99999997E-7 : f32
    %45 = vector.broadcast %cst_17 : f32 to vector<16x1xf32>
    %46 = arith.addf %44, %45 : vector<16x1xf32>
    %47 = vector.broadcast %46 : vector<16x1xf32> to vector<16x8xf32>
    %48 = arith.divf %39, %47 : vector<16x8xf32>
    %49 = vector.extract_strided_slice %8 {offsets = [0, 24], sizes = [16, 8], strides = [1, 1]} : vector<16x32xf32> to vector<16x8xf32>
    %50 = vector.extract_strided_slice %10 {offsets = [0, 24], sizes = [8, 8], strides = [1, 1]} : vector<8x32xf32> to vector<8x8xf32>
    %cst_18 = arith.constant dense<0.000000e+00> : vector<16x8xf32>
    %51 = tpu.matmul %49, %50, %cst_18 {dimension_numbers = #tpu.dot_dimension_numbers<[1], [0], [0], [1], [0, 0, 1, 1], [], []>} : vector<16x8xf32>, vector<8x8xf32>, vector<16x8xf32> -> vector<16x8xf32>
    %52 = vector.extract_strided_slice %12 {offsets = [0, 24], sizes = [1, 8], strides = [1, 1]} : vector<1x32xf32> to vector<1x8xf32>
    %53 = vector.broadcast %52 : vector<1x8xf32> to vector<16x8xf32>
    %54 = arith.mulf %49, %53 : vector<16x8xf32>
    %cst_19 = arith.constant dense<0.000000e+00> : vector<16xf32>
    %55 = vector.multi_reduction <add>, %54, %cst_19 [1] : vector<16x8xf32> to vector<16xf32>
    %56 = vector.shape_cast %55 : vector<16xf32> to vector<16x1xf32>
    %cst_20 = arith.constant 9.99999997E-7 : f32
    %57 = vector.broadcast %cst_20 : f32 to vector<16x1xf32>
    %58 = arith.addf %56, %57 : vector<16x1xf32>
    %59 = vector.broadcast %58 : vector<16x1xf32> to vector<16x8xf32>
    %60 = arith.divf %51, %59 : vector<16x8xf32>
    %61 = tpu.concatenate %24, %36, %48, %60 in 1 : vector<16x8xf32>, vector<16x8xf32>, vector<16x8xf32>, vector<16x8xf32> -> vector<16x32xf32>
    %62 = arith.truncf %61 : vector<16x32xf32> to vector<16x32xbf16>
    %c0_21 = arith.constant 0 : index
    %c0_22 = arith.constant 0 : index
    %c0_23 = arith.constant 0 : index
    %63 = vector.load %arg5[%c0_21, %c0_22, %c0_23] : memref<1x16x32xbf16, #tpu.memory_space<vmem>>, vector<1x16x32xbf16>
    %64 = vector.shape_cast %63 : vector<1x16x32xbf16> to vector<16x32xbf16>
    %65 = vector.shape_cast %62 : vector<16x32xbf16> to vector<1x16x32xbf16>
    tpu.vector_store %arg5[%c0_21, %c0_22, %c0_23], %65 {strides = array<i32>} : memref<1x16x32xbf16, #tpu.memory_space<vmem>>, vector<1x16x32xbf16>,
    return
  }
  func.func @transform_0(%arg0: i32, %arg1: i32) -> (i32, i32, i32) {
    %c0_i32 = arith.constant 0 : i32
    %c0_i32_0 = arith.constant 0 : i32
    return %arg0, %arg1, %c0_i32 : i32, i32, i32
  }
  func.func @transform_1(%arg0: i32, %arg1: i32) -> (i32, i32, i32) {
    %c0_i32 = arith.constant 0 : i32
    %c0_i32_0 = arith.constant 0 : i32
    %c0_i32_1 = arith.constant 0 : i32
    return %arg0, %c0_i32, %c0_i32_0 : i32, i32, i32
  }
  func.func @transform_2(%arg0: i32, %arg1: i32) -> (i32, i32, i32) {
    %c0_i32 = arith.constant 0 : i32
    %c0_i32_0 = arith.constant 0 : i32
    %c0_i32_1 = arith.constant 0 : i32
    return %arg0, %c0_i32, %c0_i32_0 : i32, i32, i32
  }
  func.func @transform_3(%arg0: i32, %arg1: i32) -> (i32, i32, i32) {
    %c0_i32 = arith.constant 0 : i32
    %c0_i32_0 = arith.constant 0 : i32
    return %arg0, %arg1, %c0_i32 : i32, i32, i32
  }
}

module attributes {stable_mosaic.version = 11 : i64} {
  func.func @kernel(%arg0: i32, %arg1: i32, %arg2: i32, %arg3: memref<32x32xbf16, #tpu.memory_space<vmem>>, %arg4: memref<32x32xbf16, #tpu.memory_space<vmem>>, %arg5: memref<1x32xf32, #tpu.memory_space<vmem>>, %arg6: memref<32x32xf32, #tpu.memory_space<vmem>>) attributes {dimension_semantics = [#tpu.dimension_semantics<parallel>, #tpu.dimension_semantics<parallel>, #tpu.dimension_semantics<arbitrary>], iteration_bounds = array<i64: 1, 1, 1>, scalar_prefetch = 0 : i64, scratch_operands = 0 : i64, tpu.core_type = #tpu.core_type<tc>, window_params = [{transform_indices = @transform_0, window_bounds = array<i64: 32, 32>}, {transform_indices = @transform_1, window_bounds = array<i64: 32, 32>}, {transform_indices = @transform_2, window_bounds = array<i64: 1, 32>}, {transform_indices = @transform_3, window_bounds = array<i64: 32, 32>}]} {
    %c0_i32 = arith.constant 0 : i32
    %0 = arith.cmpi eq, %arg2, %c0_i32 : i32
    %1 = arith.extui %0 : i1 to i32
    %c0_i32_0 = arith.constant 0 : i32
    %2 = arith.cmpi ne, %1, %c0_i32_0 : i32
    scf.if %2 {
      %cst_10 = arith.constant 0.000000e+00 : f32
      %12 = vector.broadcast %cst_10 : f32 to vector<32x32xf32>
      %c0_11 = arith.constant 0 : index
      %c0_12 = arith.constant 0 : index
      %13 = vector.load %arg6[%c0_11, %c0_12] : memref<32x32xf32, #tpu.memory_space<vmem>>, vector<32x32xf32>
      tpu.vector_store %arg6[%c0_11, %c0_12], %12 {strides = array<i32>} : memref<32x32xf32, #tpu.memory_space<vmem>>, vector<32x32xf32>,
    } else {
    }
    %c0 = arith.constant 0 : index
    %c0_1 = arith.constant 0 : index
    %3 = vector.load %arg6[%c0, %c0_1] : memref<32x32xf32, #tpu.memory_space<vmem>>, vector<32x32xf32>
    %c0_2 = arith.constant 0 : index
    %c0_3 = arith.constant 0 : index
    %4 = vector.load %arg3[%c0_2, %c0_3] : memref<32x32xbf16, #tpu.memory_space<vmem>>, vector<32x32xbf16>
    %c0_4 = arith.constant 0 : index
    %c0_5 = arith.constant 0 : index
    %5 = vector.load %arg4[%c0_4, %c0_5] : memref<32x32xbf16, #tpu.memory_space<vmem>>, vector<32x32xbf16>
    %cst = arith.constant dense<0.000000e+00> : vector<32x32xf32>
    %6 = tpu.matmul %4, %5, %cst {dimension_numbers = #tpu.dot_dimension_numbers<[1], [0], [0], [1], [0, 0, 1, 1], [], []>} : vector<32x32xbf16>, vector<32x32xbf16>, vector<32x32xf32> -> vector<32x32xf32>
    %7 = arith.addf %3, %6 : vector<32x32xf32>
    %c0_6 = arith.constant 0 : index
    %c0_7 = arith.constant 0 : index
    %8 = vector.load %arg6[%c0_6, %c0_7] : memref<32x32xf32, #tpu.memory_space<vmem>>, vector<32x32xf32>
    tpu.vector_store %arg6[%c0_6, %c0_7], %7 {strides = array<i32>} : memref<32x32xf32, #tpu.memory_space<vmem>>, vector<32x32xf32>,
    %c0_i32_8 = arith.constant 0 : i32
    %9 = arith.cmpi eq, %arg2, %c0_i32_8 : i32
    %10 = arith.extui %9 : i1 to i32
    %c0_i32_9 = arith.constant 0 : i32
    %11 = arith.cmpi ne, %10, %c0_i32_9 : i32
    scf.if %11 {
      %c0_10 = arith.constant 0 : index
      %c0_11 = arith.constant 0 : index
      %12 = vector.load %arg6[%c0_10, %c0_11] : memref<32x32xf32, #tpu.memory_space<vmem>>, vector<32x32xf32>
      %c0_12 = arith.constant 0 : index
      %c0_13 = arith.constant 0 : index
      %13 = vector.load %arg5[%c0_12, %c0_13] : memref<1x32xf32, #tpu.memory_space<vmem>>, vector<1x32xf32>
      %14 = vector.broadcast %13 : vector<1x32xf32> to vector<32x32xf32>
      %15 = arith.addf %12, %14 : vector<32x32xf32>
      %c0_14 = arith.constant 0 : index
      %c0_15 = arith.constant 0 : index
      %16 = vector.load %arg6[%c0_14, %c0_15] : memref<32x32xf32, #tpu.memory_space<vmem>>, vector<32x32xf32>
      tpu.vector_store %arg6[%c0_14, %c0_15], %15 {strides = array<i32>} : memref<32x32xf32, #tpu.memory_space<vmem>>, vector<32x32xf32>,
    } else {
    }
    return
  }
  func.func @transform_0(%arg0: i32, %arg1: i32, %arg2: i32) -> (i32, i32) {
    %c0_i32 = arith.constant 0 : i32
    return %arg0, %arg2 : i32, i32
  }
  func.func @transform_1(%arg0: i32, %arg1: i32, %arg2: i32) -> (i32, i32) {
    %c0_i32 = arith.constant 0 : i32
    return %arg2, %arg1 : i32, i32
  }
  func.func @transform_2(%arg0: i32, %arg1: i32, %arg2: i32) -> (i32, i32) {
    %c0_i32 = arith.constant 0 : i32
    %c0_i32_0 = arith.constant 0 : i32
    return %c0_i32, %arg1 : i32, i32
  }
  func.func @transform_3(%arg0: i32, %arg1: i32, %arg2: i32) -> (i32, i32) {
    %c0_i32 = arith.constant 0 : i32
    return %arg0, %arg1 : i32, i32
  }
}

</mosaic_0001>

<llo_original>
// kernel: linear_attention_module.7
$region0: #{linear_attention_module.7}
  #allocation0 [shape = 'u32[]', space=smem, size = 0x4, offset = 0x4, fixed_abs, tag = 'smem constant byte address 0x4 - core index']
  #allocation1 [shape = 'u32[144,128]{1,0:T(1,128)}', space=vmem, size = 0x12000, scoped, tag = 'internal scratch']
  %s0 = inlined_call_operand.vmem [shape: bf16[2,16,64], index: 0, kind: input, shape index: {}]
  %s1 = inlined_call_operand.vmem [shape: f32[2,8,32], index: 1, kind: output, shape index: {0}]
  %s2 = inlined_call_operand.vmem [shape: f32[2,1,32], index: 2, kind: output, shape index: {1}]
  %3 = xla_tuple %s1, %s2
  %s4 = sld [smem:[#allocation0]]
  $region49: #{linear_attention_module.7} parent=0
    _
  %s6 = ssub.s32 1, %s4
  %s7 = scalar_select 0, %s6, %s4
  loop: start=0, step=1, limit=4
  $region2: #{linear_attention_module.7} parent=0 // loop_pre_header
    _
  $region3: #{linear_attention_module.7} parent=0 // loop_header
    %s9 = sphi 0, %s13
    %p10 = scmp.ge.s32.totalorder %s9, 4
    %s16 = sphi 0, %s28
    %s17 = sphi 0, %s24
    %s18 = sphi 0, %s16
    %s19 = sphi 0, %s17
    %s20 = sphi 0, %s18
    %s21 = sphi 0, %s19
    %s33 = sphi 0, %s35
    %s36 = sphi 0, %s33
    %s37 = sphi 0, %s36
    %s53 = sphi 0, %s37
    %s59 = sphi 0, %s61
    %s62 = sphi 0, %s59
    %s63 = sphi 0, %s62
    %s79 = sphi 0, %s63
    %s85 = sphi 0, %s87
    %s88 = sphi 0, %s85
    %s89 = sphi 0, %s88
    %s105 = sphi 0, %s89
  $region4: #{linear_attention_module.7} parent=0 // loop_header_branch
    %12 = sbr.rel (%p10) target = $region8
  $region5: #{linear_attention_module.7} parent=0 // loop_body
    %s14 = ssub.s32 %s9, 1
    %s15 = ssub.s32 %s9, 2
    %s22 = sadd.s32 1, %s17
    %p23 = scmp.ge.s32.totalorder %s22, 1
    %s24 = scalar_select %p23, 0, %s22
    %s25 = sadd.s32 1, %s16
    %s26 = scalar_select %p23, %s25, %s16
    %p27 = scmp.ge.s32.totalorder %s26, 2
    %s28 = scalar_select %p27, 0, %s26
    %s29 = ssub.s32 %s16, %s28
    %s30 = ssub.s32 %s17, %s24
    %s31 = sor.u32 %s29, %s30
    %p32 = scmp.eq.s32.totalorder %s31, 0
    %s34 = sadd.s32 %s33, 1
    %s35 = scalar_select %p32, %s33, %s34
    %p38 = pneg %p32
    %p39 = scmp.eq.s32.totalorder %s9, 1
    %p40 = por %p38, %p39
    %p41 = scmp.ne.s32.totalorder %s33, %s36
    %p42 = scmp.eq.s32.totalorder %s9, 0
    %p43 = por %p41, %p42
    %p44 = scmp.ne.s32.totalorder %s33, %s36
    %p45 = scmp.eq.s32.totalorder %s14, 1
    %p46 = por %p44, %p45
    %p47 = scmp.ne.s32.totalorder %s36, %s37
    %p48 = scmp.eq.s32.totalorder %s14, 0
    %p49 = por %p47, %p48
    %p50 = scmp.ne.s32.totalorder %s36, %s37
    %p51 = scmp.eq.s32.totalorder %s15, 1
    %p52 = por %p50, %p51
    %p54 = scmp.ne.s32.totalorder %s37, %s53
    %p55 = scmp.eq.s32.totalorder %s15, 0
    %p56 = por %p54, %p55
    %s57 = ssub.s32 %s16, %s28
    %p58 = scmp.eq.s32.totalorder %s57, 0
    %s60 = sadd.s32 %s59, 1
    %s61 = scalar_select %p58, %s59, %s60
    %p64 = pneg %p58
    %p65 = scmp.eq.s32.totalorder %s9, 1
    %p66 = por %p64, %p65
    %p67 = scmp.ne.s32.totalorder %s59, %s62
    %p68 = scmp.eq.s32.totalorder %s9, 0
    %p69 = por %p67, %p68
    %p70 = scmp.ne.s32.totalorder %s59, %s62
    %p71 = scmp.eq.s32.totalorder %s14, 1
    %p72 = por %p70, %p71
    %p73 = scmp.ne.s32.totalorder %s62, %s63
    %p74 = scmp.eq.s32.totalorder %s14, 0
    %p75 = por %p73, %p74
    %p76 = scmp.ne.s32.totalorder %s62, %s63
    %p77 = scmp.eq.s32.totalorder %s15, 1
    %p78 = por %p76, %p77
    %p80 = scmp.ne.s32.totalorder %s63, %s79
    %p81 = scmp.eq.s32.totalorder %s15, 0
    %p82 = por %p80, %p81
    %s83 = ssub.s32 %s16, %s28
    %p84 = scmp.eq.s32.totalorder %s83, 0
    %s86 = sadd.s32 %s85, 1
    %s87 = scalar_select %p84, %s85, %s86
    %p90 = pneg %p84
    %p91 = scmp.eq.s32.totalorder %s9, 1
    %p92 = por %p90, %p91
    %p93 = scmp.ne.s32.totalorder %s85, %s88
    %p94 = scmp.eq.s32.totalorder %s9, 0
    %p95 = por %p93, %p94
    %p96 = scmp.ne.s32.totalorder %s85, %s88
    %p97 = scmp.eq.s32.totalorder %s14, 1
    %p98 = por %p96, %p97
    %p99 = scmp.ne.s32.totalorder %s88, %s89
    %p100 = scmp.eq.s32.totalorder %s14, 0
    %p101 = por %p99, %p100
    %p102 = scmp.ne.s32.totalorder %s88, %s89
    %p103 = scmp.eq.s32.totalorder %s15, 1
    %p104 = por %p102, %p103
    %p106 = scmp.ne.s32.totalorder %s89, %s105
    %p107 = scmp.eq.s32.totalorder %s15, 0
    %p108 = por %p106, %p107
    %p109 = scmp.le.s32.totalorder 1, %s9
    %p110 = scmp.lt.s32.totalorder %s9, 3
    %p111 = pnand %p109, %p110
    %p112 = pneg %p111
    // Predicated region
    $region9: #{linear_attention_module.7} parent=5 // pred_check
      _
    $region10: #{linear_attention_module.7} parent=5 // pred_check_branch
      %114 = sbr.rel (%p111) target = $region12
    $region11: #{linear_attention_module.7} parent=5 // pred_region
      %s115 = ssub.s32 %s9, 1
    $region12: #{linear_attention_module.7} parent=5 // pred_fallthru
      _
    %p116 = scmp.lt.s32.totalorder %s9, 2
    // Predicated region
    $region13: #{linear_attention_module.7} parent=5 // pred_check
      %p117 = pneg %p116
    $region14: #{linear_attention_module.7} parent=5 // pred_check_branch
      %119 = sbr.rel (%p117) target = $region16
    $region15: #{linear_attention_module.7} parent=5 // pred_region
      // Predicated region
      $region17: #{linear_attention_module.7} parent=15 // pred_check
        %p120 = pneg %p43
      $region18: #{linear_attention_module.7} parent=15 // pred_check_branch
        %122 = sbr.rel (%p120) target = $region20
      $region19: #{linear_attention_module.7} parent=15 // pred_region
        %s123 = smul.u32 2, %s17
        %p124 = scmp.lt.s32.totalorder %s16, 1
        %s125 = scalar_select %p124, %s16, 1
        %p126 = scmp.lt.s32.totalorder %s123, 1
        %s127 = scalar_select %p126, %s123, 1
        %s128 = smul.addr %s125, 2
        %s129 = sadd.s32 %s127, %s128
        %s130 = smul.addr %s129, 4
        %s131 = scalar_lea.vmem %s0, %s130
        %s132 = smul.u32 2, %s17
      $region20: #{linear_attention_module.7} parent=15 // pred_fallthru
        _
    $region16: #{linear_attention_module.7} parent=5 // pred_fallthru
      _
    %p133 = scmp.le.s32.totalorder 1, %s9
    %p134 = scmp.lt.s32.totalorder %s9, 3
    %p135 = pnand %p133, %p134
    %p136 = pneg %p135
    // Predicated region
    $region21: #{linear_attention_module.7} parent=5 // pred_check
      _
    $region22: #{linear_attention_module.7} parent=5 // pred_check_branch
      %138 = sbr.rel (%p135) target = $region24
    $region23: #{linear_attention_module.7} parent=5 // pred_region
      %s139 = ssub.s32 %s9, 1
      %s140 = smul.u32 2, %s19
      %p141 = scmp.lt.s32.totalorder %s18, 1
      %s142 = scalar_select %p141, %s18, 1
      %p143 = scmp.lt.s32.totalorder %s140, 1
      %s144 = scalar_select %p143, %s140, 1
      %s145 = smul.addr %s142, 2
      %s146 = sadd.s32 %s144, %s145
      %s147 = smul.addr %s146, 4
      %s148 = scalar_lea.vmem %s0, %s147
      %p149 = pneg %p49
      %p150 = pneg %p46
      %p151 = pneg %p75
      %p152 = pneg %p72
      %p153 = scmp.lt.s32.totalorder %s18, 1
      %s154 = scalar_select %p153, %s18, 1
      %s155 = smul.addr %s154, 8
      %s156 = scalar_lea.vmem %s1, %s155
      %p157 = pneg %p101
      %p158 = pneg %p98
      %p159 = scmp.lt.s32.totalorder %s18, 1
      %s160 = scalar_select %p159, %s18, 1
      %s161 = scalar_lea.vmem %s2, %s160
      %s162 = smul.u32 2, %s19
      %p163 = scmp.lt.s32.totalorder %s18, 1
      %s164 = scalar_select %p163, %s18, 1
      %p165 = scmp.lt.s32.totalorder %s162, 1
      %s166 = scalar_select %p165, %s162, 1
      %s167 = smul.addr %s164, 2
      %s168 = sadd.s32 %s166, %s167
      %s169 = smul.addr %s168, 4
      %s170 = scalar_lea.vmem %s0, %s169
      %s171 = smul.u32 2, %s19
      %p172 = scmp.lt.s32.totalorder %s18, 1
      %s173 = scalar_select %p172, %s18, 1
      %s174 = smul.addr %s173, 8
      %s175 = scalar_lea.vmem %s1, %s174
      %p176 = scmp.lt.s32.totalorder %s18, 1
      %s177 = scalar_select %p176, %s18, 1
      %s178 = scalar_lea.vmem %s2, %s177
      %p180 = scmp.eq.s32.totalorder %s19, 0
      // Predicated region
      $region25: #{linear_attention_module.7} parent=23 // pred_check
        %p181 = pneg %p180
      $region26: #{linear_attention_module.7} parent=23 // pred_check_branch
        %183 = sbr.rel (%p181) target = $region28
      $region27: #{linear_attention_module.7} parent=23 // pred_region
        %vm184 = vcmask 261120
        %185 = vst.msk [vmem:[%s175] sm:$0xff] %vm184, 0.0
        %vm186 = vcmask 253952
        %187 = vst.msk [vmem:[%s178] sm:$0x1] %vm186, 0.0
      $region28: #{linear_attention_module.7} parent=23 // pred_fallthru
        _
      %v188 = vld [vmem:[%s170] sm:$0xf]
      %v189 = vld [vmem:[%s170 + $0x4] sm:$0xf]
      %v190 = vunpack.c.l.bf16 %v188
      %v191 = vunpack.c.l.bf16 %v189
      %vm192 = vcmp.gt.f32.partialorder %v190, 0.0
      %vm193 = vcmp.gt.f32.partialorder %v191, 0.0
      %v194 = vadd.f32 %v190, 1.0
      %v195 = vadd.f32 %v191, 1.0
      %v196 = vmul.f32 %v190, 1.442695
      %v197 = vpow.pop %v196
      %v198 = vmul.f32 %v191, 1.442695
      %v199 = vpow.pop %v198
      %v200 = vsel %vm192, %v194, %v197
      %v201 = vsel %vm193, %v195, %v199
      %v202 = vld [vmem:[%s178] sm:$0x1]
      %vm203 = vcmask 261120
      %v204 = vsel %vm203, %v200, 0.0
      %v205 = vsel %vm203, %v201, 0.0
      %v206 = vadd.f32 %v204, %v205
      %v207 = vrot.slane %v206, 4
      %v208 = vadd.f32 %v206, %v207
      %v209 = vrot.slane %v208, 2
      %v210 = vadd.f32 %v208, %v209
      %v211 = vrot.slane %v210, 1
      %v212 = vadd.f32 %v210, %v211
      %v213 = vadd.f32 %v202, %v212
      %vm214 = vcmask 253952
      %215 = vst.msk [vmem:[%s178] sm:$0x1] %vm214, %v213
      %v216 = vpack.c.bf16 %v201, %v200
      %v217 = vld [vmem:[%s170] sm:$0xf]
      %v218 = vld [vmem:[%s170 + $0x4] sm:$0xf]
      %219 = vxpose.xlu0.c.b16.start [1/8] %v216, 128
      %220 = vxpose.xlu0.c.b16.cont [2/8] 0, 128
      %221 = vxpose.xlu0.c.b16.cont [3/8] 0, 128
      %222 = vxpose.xlu0.c.b16.cont [4/8] 0, 128
      %223 = vxpose.xlu0.c.b16.cont [5/8] 0, 128
      %224 = vxpose.xlu0.c.b16.cont [6/8] 0, 128
      %225 = vxpose.xlu0.c.b16.cont [7/8] 0, 128
      %226 = vxpose.xlu0.c.b16.end [8/8] 0, 128
      %v227 = vpop.trf.xlu0
      %v228 = vpop.trf.xlu0
      %v229 = vpop.trf.xlu0
      %v230 = vpop.trf.xlu0
      %v231 = vpop.trf.xlu0
      %v232 = vpop.trf.xlu0
      %v233 = vpop.trf.xlu0
      %v234 = vpop.trf.xlu0
      %v237 = vunpack.c.l.b16 %v217
      %v238 = vunpack.c.l.b16 %v218
      %v239 = vpack.c.b16 %v238, %v237
      %240 = vrot.lane.b32.xlu0 %v239, 96
      %v241 = vpop.permute.xlu0 %240
      %vm243 = vcmask 130048
      %v245 = vsel %vm243, %v227, 0
      %247 = vmatprep.subr.bf16.mxu0 0
      %248 = vmatpush1.bf16.msra.mxu0 %v241
      %249 = vmatprep.subr.bf16.mxu0 0
      %250 = vmatpush1.bf16.msra.mxu0 0
      %251 = vmatprep.subr.bf16.mxu0 0
      %252 = vmatpush1.bf16.msra.mxu0 0
      %253 = vmatprep.subr.bf16.mxu0 0
      %254 = vmatpush1.bf16.msra.mxu0 0
      %255 = vmatprep.subr.bf16.mxu0 0
      %256 = vmatpush1.bf16.msra.mxu0 0
      %257 = vmatprep.subr.bf16.mxu0 0
      %258 = vmatpush1.bf16.msra.mxu0 0
      %259 = vmatprep.subr.bf16.mxu0 0
      %260 = vmatpush1.bf16.msra.mxu0 0
      %261 = vmatprep.subr.bf16.mxu0 0
      %262 = vmatpush1.bf16.msra.mxu0 0
      %263 = vmatprep.subr.bf16.mxu0 0
      %264 = vmatpush1.bf16.msra.mxu0 0
      %265 = vmatprep.subr.bf16.mxu0 0
      %266 = vmatpush1.bf16.msra.mxu0 0
      %267 = vmatprep.subr.bf16.mxu0 0
      %268 = vmatpush1.bf16.msra.mxu0 0
      %269 = vmatprep.subr.bf16.mxu0 0
      %270 = vmatpush1.bf16.msra.mxu0 0
      %271 = vmatprep.subr.bf16.mxu0 0
      %272 = vmatpush1.bf16.msra.mxu0 0
      %273 = vmatprep.subr.bf16.mxu0 0
      %274 = vmatpush1.bf16.msra.mxu0 0
      %275 = vmatprep.subr.bf16.mxu0 0
      %276 = vmatpush1.bf16.msra.mxu0 0
      %277 = vmatprep.subr.bf16.mxu0 0
      %278 = vmatpush1.bf16.msra.mxu0 0
      %279 = vmatprep.mubr.bf16.mxu0 0
      %280 = vmatmul.mubr.bf16.gmra.mrb[0].mxu0 %v245
      %v281 = vpop.f32.mrb[0].mxu0
      %v282 = vadd.f32 0.0, %v281
      %v283 = vpop.f32.mrb[0].mxu0
      %v284 = vpop.f32.mrb[0].mxu0
      %v285 = vpop.f32.mrb[0].mxu0
      %286 = vdwg.mxu0
      %288 = vrot.lane.b32.xlu0 %v216, 120
      %v289 = vpop.permute.xlu0 %288
      %291 = vxpose.xlu0.c.b16.start [1/8] %v289, 128
      %292 = vxpose.xlu0.c.b16.cont [2/8] 0, 128
      %293 = vxpose.xlu0.c.b16.cont [3/8] 0, 128
      %294 = vxpose.xlu0.c.b16.cont [4/8] 0, 128
      %295 = vxpose.xlu0.c.b16.cont [5/8] 0, 128
      %296 = vxpose.xlu0.c.b16.cont [6/8] 0, 128
      %297 = vxpose.xlu0.c.b16.cont [7/8] 0, 128
      %298 = vxpose.xlu0.c.b16.end [8/8] 0, 128
      %v299 = vpop.trf.xlu0
      %v300 = vpop.trf.xlu0
      %v301 = vpop.trf.xlu0
      %v302 = vpop.trf.xlu0
      %v303 = vpop.trf.xlu0
      %v304 = vpop.trf.xlu0
      %v305 = vpop.trf.xlu0
      %v306 = vpop.trf.xlu0
      %307 = vrot.lane.b32.xlu0 %v239, 88
      %v308 = vpop.permute.xlu0 %307
      %v311 = vsel %vm243, %v299, 0
      %313 = vmatprep.subr.bf16.mxu0 0
      %314 = vmatpush1.bf16.msra.mxu0 %v308
      %315 = vmatprep.subr.bf16.mxu0 0
      %316 = vmatpush1.bf16.msra.mxu0 0
      %317 = vmatprep.subr.bf16.mxu0 0
      %318 = vmatpush1.bf16.msra.mxu0 0
      %319 = vmatprep.subr.bf16.mxu0 0
      %320 = vmatpush1.bf16.msra.mxu0 0
      %321 = vmatprep.subr.bf16.mxu0 0
      %322 = vmatpush1.bf16.msra.mxu0 0
      %323 = vmatprep.subr.bf16.mxu0 0
      %324 = vmatpush1.bf16.msra.mxu0 0
      %325 = vmatprep.subr.bf16.mxu0 0
      %326 = vmatpush1.bf16.msra.mxu0 0
      %327 = vmatprep.subr.bf16.mxu0 0
      %328 = vmatpush1.bf16.msra.mxu0 0
      %329 = vmatprep.subr.bf16.mxu0 0
      %330 = vmatpush1.bf16.msra.mxu0 0
      %331 = vmatprep.subr.bf16.mxu0 0
      %332 = vmatpush1.bf16.msra.mxu0 0
      %333 = vmatprep.subr.bf16.mxu0 0
      %334 = vmatpush1.bf16.msra.mxu0 0
      %335 = vmatprep.subr.bf16.mxu0 0
      %336 = vmatpush1.bf16.msra.mxu0 0
      %337 = vmatprep.subr.bf16.mxu0 0
      %338 = vmatpush1.bf16.msra.mxu0 0
      %339 = vmatprep.subr.bf16.mxu0 0
      %340 = vmatpush1.bf16.msra.mxu0 0
      %341 = vmatprep.subr.bf16.mxu0 0
      %342 = vmatpush1.bf16.msra.mxu0 0
      %343 = vmatprep.subr.bf16.mxu0 0
      %344 = vmatpush1.bf16.msra.mxu0 0
      %345 = vmatprep.mubr.bf16.mxu0 0
      %346 = vmatmul.mubr.bf16.gmra.mrb[0].mxu0 %v311
      %v347 = vpop.f32.mrb[0].mxu0
      %v348 = vadd.f32 0.0, %v347
      %v349 = vpop.f32.mrb[0].mxu0
      %v350 = vpop.f32.mrb[0].mxu0
      %v351 = vpop.f32.mrb[0].mxu0
      %352 = vdwg.mxu0
      %353 = vrot.lane.b32.xlu0 %v216, 112
      %v354 = vpop.permute.xlu0 %353
      %356 = vxpose.xlu0.c.b16.start [1/8] %v354, 128
      %357 = vxpose.xlu0.c.b16.cont [2/8] 0, 128
      %358 = vxpose.xlu0.c.b16.cont [3/8] 0, 128
      %359 = vxpose.xlu0.c.b16.cont [4/8] 0, 128
      %360 = vxpose.xlu0.c.b16.cont [5/8] 0, 128
      %361 = vxpose.xlu0.c.b16.cont [6/8] 0, 128
      %362 = vxpose.xlu0.c.b16.cont [7/8] 0, 128
      %363 = vxpose.xlu0.c.b16.end [8/8] 0, 128
      %v364 = vpop.trf.xlu0
      %v365 = vpop.trf.xlu0
      %v366 = vpop.trf.xlu0
      %v367 = vpop.trf.xlu0
      %v368 = vpop.trf.xlu0
      %v369 = vpop.trf.xlu0
      %v370 = vpop.trf.xlu0
      %v371 = vpop.trf.xlu0
      %372 = vrot.lane.b32.xlu0 %v239, 80
      %v373 = vpop.permute.xlu0 %372
      %v376 = vsel %vm243, %v364, 0
      %378 = vmatprep.subr.bf16.mxu0 0
      %379 = vmatpush1.bf16.msra.mxu0 %v373
      %380 = vmatprep.subr.bf16.mxu0 0
      %381 = vmatpush1.bf16.msra.mxu0 0
      %382 = vmatprep.subr.bf16.mxu0 0
      %383 = vmatpush1.bf16.msra.mxu0 0
      %384 = vmatprep.subr.bf16.mxu0 0
      %385 = vmatpush1.bf16.msra.mxu0 0
      %386 = vmatprep.subr.bf16.mxu0 0
      %387 = vmatpush1.bf16.msra.mxu0 0
      %388 = vmatprep.subr.bf16.mxu0 0
      %389 = vmatpush1.bf16.msra.mxu0 0
      %390 = vmatprep.subr.bf16.mxu0 0
      %391 = vmatpush1.bf16.msra.mxu0 0
      %392 = vmatprep.subr.bf16.mxu0 0
      %393 = vmatpush1.bf16.msra.mxu0 0
      %394 = vmatprep.subr.bf16.mxu0 0
      %395 = vmatpush1.bf16.msra.mxu0 0
      %396 = vmatprep.subr.bf16.mxu0 0
      %397 = vmatpush1.bf16.msra.mxu0 0
      %398 = vmatprep.subr.bf16.mxu0 0
      %399 = vmatpush1.bf16.msra.mxu0 0
      %400 = vmatprep.subr.bf16.mxu0 0
      %401 = vmatpush1.bf16.msra.mxu0 0
      %402 = vmatprep.subr.bf16.mxu0 0
      %403 = vmatpush1.bf16.msra.mxu0 0
      %404 = vmatprep.subr.bf16.mxu0 0
      %405 = vmatpush1.bf16.msra.mxu0 0
      %406 = vmatprep.subr.bf16.mxu0 0
      %407 = vmatpush1.bf16.msra.mxu0 0
      %408 = vmatprep.subr.bf16.mxu0 0
      %409 = vmatpush1.bf16.msra.mxu0 0
      %410 = vmatprep.mubr.bf16.mxu0 0
      %411 = vmatmul.mubr.bf16.gmra.mrb[0].mxu0 %v376
      %v412 = vpop.f32.mrb[0].mxu0
      %v413 = vadd.f32 0.0, %v412
      %v414 = vpop.f32.mrb[0].mxu0
      %v415 = vpop.f32.mrb[0].mxu0
      %v416 = vpop.f32.mrb[0].mxu0
      %417 = vdwg.mxu0
      %418 = vrot.lane.b32.xlu0 %v216, 104
      %v419 = vpop.permute.xlu0 %418
      %421 = vxpose.xlu0.c.b16.start [1/8] %v419, 128
      %422 = vxpose.xlu0.c.b16.cont [2/8] 0, 128
      %423 = vxpose.xlu0.c.b16.cont [3/8] 0, 128
      %424 = vxpose.xlu0.c.b16.cont [4/8] 0, 128
      %425 = vxpose.xlu0.c.b16.cont [5/8] 0, 128
      %426 = vxpose.xlu0.c.b16.cont [6/8] 0, 128
      %427 = vxpose.xlu0.c.b16.cont [7/8] 0, 128
      %428 = vxpose.xlu0.c.b16.end [8/8] 0, 128
      %v429 = vpop.trf.xlu0
      %v430 = vpop.trf.xlu0
      %v431 = vpop.trf.xlu0
      %v432 = vpop.trf.xlu0
      %v433 = vpop.trf.xlu0
      %v434 = vpop.trf.xlu0
      %v435 = vpop.trf.xlu0
      %v436 = vpop.trf.xlu0
      %437 = vrot.lane.b32.xlu0 %v239, 72
      %v438 = vpop.permute.xlu0 %437
      %v441 = vsel %vm243, %v429, 0
      %443 = vmatprep.subr.bf16.mxu0 0
      %444 = vmatpush1.bf16.msra.mxu0 %v438
      %445 = vmatprep.subr.bf16.mxu0 0
      %446 = vmatpush1.bf16.msra.mxu0 0
      %447 = vmatprep.subr.bf16.mxu0 0
      %448 = vmatpush1.bf16.msra.mxu0 0
      %449 = vmatprep.subr.bf16.mxu0 0
      %450 = vmatpush1.bf16.msra.mxu0 0
      %451 = vmatprep.subr.bf16.mxu0 0
      %452 = vmatpush1.bf16.msra.mxu0 0
      %453 = vmatprep.subr.bf16.mxu0 0
      %454 = vmatpush1.bf16.msra.mxu0 0
      %455 = vmatprep.subr.bf16.mxu0 0
      %456 = vmatpush1.bf16.msra.mxu0 0
      %457 = vmatprep.subr.bf16.mxu0 0
      %458 = vmatpush1.bf16.msra.mxu0 0
      %459 = vmatprep.subr.bf16.mxu0 0
      %460 = vmatpush1.bf16.msra.mxu0 0
      %461 = vmatprep.subr.bf16.mxu0 0
      %462 = vmatpush1.bf16.msra.mxu0 0
      %463 = vmatprep.subr.bf16.mxu0 0
      %464 = vmatpush1.bf16.msra.mxu0 0
      %465 = vmatprep.subr.bf16.mxu0 0
      %466 = vmatpush1.bf16.msra.mxu0 0
      %467 = vmatprep.subr.bf16.mxu0 0
      %468 = vmatpush1.bf16.msra.mxu0 0
      %469 = vmatprep.subr.bf16.mxu0 0
      %470 = vmatpush1.bf16.msra.mxu0 0
      %471 = vmatprep.subr.bf16.mxu0 0
      %472 = vmatpush1.bf16.msra.mxu0 0
      %473 = vmatprep.subr.bf16.mxu0 0
      %474 = vmatpush1.bf16.msra.mxu0 0
      %475 = vmatprep.mubr.bf16.mxu0 0
      %476 = vmatmul.mubr.bf16.gmra.mrb[0].mxu0 %v441
      %v477 = vpop.f32.mrb[0].mxu0
      %v478 = vadd.f32 0.0, %v477
      %v479 = vpop.f32.mrb[0].mxu0
      %v480 = vpop.f32.mrb[0].mxu0
      %v481 = vpop.f32.mrb[0].mxu0
      %482 = vdwg.mxu0
      %v483 = vld [vmem:[%s175] sm:$0xff]
      %485 = vrot.lane.b32.xlu0 %v348, 8
      %v486 = vpop.permute.xlu0 %485
      %489 = vrot.lane.b32.xlu0 %v413, 16
      %v490 = vpop.permute.xlu0 %489
      %493 = vrot.lane.b32.xlu0 %v478, 24
      %v494 = vpop.permute.xlu0 %493
      %vm496 = vcmask 64512
      %v497 = vsel %vm496, %v282, %v486
      %v498 = vsel %vm243, %v497, %v490
      %vm499 = vcmask 195584
      %v500 = vsel %vm499, %v498, %v494
      %v501 = vadd.f32 %v483, %v500
      %502 = vst.msk [vmem:[%s175] sm:$0xff] %vm203, %v501
      %p503 = scmp.lt.s32.totalorder %s18, 1
      %s504 = scalar_select %p503, %s18, 1
      %s505 = smul.addr %s504, 8
      %s506 = scalar_lea.vmem %s1, %s505
      %p507 = scmp.lt.s32.totalorder %s18, 1
      %s508 = scalar_select %p507, %s18, 1
      %s509 = scalar_lea.vmem %s2, %s508
      // Predicated region
      $region29: #{linear_attention_module.7} parent=23 // pred_check
        %p510 = pneg %p72
      $region30: #{linear_attention_module.7} parent=23 // pred_check_branch
        %512 = sbr.rel (%p510) target = $region32
      $region31: #{linear_attention_module.7} parent=23 // pred_region
        _
      $region32: #{linear_attention_module.7} parent=23 // pred_fallthru
        _
      // Predicated region
      $region33: #{linear_attention_module.7} parent=23 // pred_check
        %p513 = pneg %p98
      $region34: #{linear_attention_module.7} parent=23 // pred_check_branch
        %515 = sbr.rel (%p513) target = $region36
      $region35: #{linear_attention_module.7} parent=23 // pred_region
        _
      $region36: #{linear_attention_module.7} parent=23 // pred_fallthru
        _
    $region24: #{linear_attention_module.7} parent=5 // pred_fallthru
      _
    %p516 = scmp.le.s32.totalorder 2, %s9
    // Predicated region
    $region37: #{linear_attention_module.7} parent=5 // pred_check
      %p517 = pneg %p516
    $region38: #{linear_attention_module.7} parent=5 // pred_check_branch
      %519 = sbr.rel (%p517) target = $region40
    $region39: #{linear_attention_module.7} parent=5 // pred_region
      %s520 = ssub.s32 %s9, 2
      // Predicated region
      $region41: #{linear_attention_module.7} parent=39 // pred_check
        %p521 = pneg %p78
      $region42: #{linear_attention_module.7} parent=39 // pred_check_branch
        %523 = sbr.rel (%p521) target = $region44
      $region43: #{linear_attention_module.7} parent=39 // pred_region
        %p524 = scmp.lt.s32.totalorder %s20, 1
        %s525 = scalar_select %p524, %s20, 1
        %s526 = smul.addr %s525, 8
        %s527 = scalar_lea.vmem %s1, %s526
      $region44: #{linear_attention_module.7} parent=39 // pred_fallthru
        _
      // Predicated region
      $region45: #{linear_attention_module.7} parent=39 // pred_check
        %p528 = pneg %p104
      $region46: #{linear_attention_module.7} parent=39 // pred_check_branch
        %530 = sbr.rel (%p528) target = $region48
      $region47: #{linear_attention_module.7} parent=39 // pred_region
        %p531 = scmp.lt.s32.totalorder %s20, 1
        %s532 = scalar_select %p531, %s20, 1
        %s533 = scalar_lea.vmem %s2, %s532
      $region48: #{linear_attention_module.7} parent=39 // pred_fallthru
        _
    $region40: #{linear_attention_module.7} parent=5 // pred_fallthru
      _
  $region6: #{linear_attention_module.7} parent=0 // loop_footer
    %s13 = sadd.s32 1, %s9
  $region7: #{linear_attention_module.7} parent=0 // loop_footer_branch
    %8 = sbr.rel target = $region3
  $region8: #{linear_attention_module.7} parent=0 // loop_exit
    _

// kernel: linear_attention_module.8
$region0: #{linear_attention_module.8}
  #allocation0 [shape = 'u32[]', space=smem, size = 0x4, offset = 0x4, fixed_abs, tag = 'smem constant byte address 0x4 - core index']
  #allocation1 [shape = 'u32[144,128]{1,0:T(1,128)}', space=vmem, size = 0x12000, scoped, tag = 'internal scratch']
  %s0 = inlined_call_operand.vmem [shape: bf16[2,16,32], index: 0, kind: input, shape index: {}]
  %s1 = inlined_call_operand.vmem [shape: f32[2,8,32], index: 1, kind: input, shape index: {}]
  %s2 = inlined_call_operand.vmem [shape: f32[2,1,32], index: 2, kind: input, shape index: {}]
  %s3 = inlined_call_operand.vmem [shape: bf16[2,16,32], index: 3, kind: output, shape index: {}]
  %s4 = sld [smem:[#allocation0]]
  $region45: #{linear_attention_module.8} parent=0
    _
  %s6 = ssub.s32 1, %s4
  %s7 = scalar_select 0, %s6, %s4
  loop: start=0, step=1, limit=4
  $region2: #{linear_attention_module.8} parent=0 // loop_pre_header
    _
  $region3: #{linear_attention_module.8} parent=0 // loop_header
    %s9 = sphi 0, %s13
    %p10 = scmp.ge.s32.totalorder %s9, 4
    %s16 = sphi 0, %s28
    %s17 = sphi 0, %s24
    %s18 = sphi 0, %s16
    %s19 = sphi 0, %s17
    %s20 = sphi 0, %s18
    %s21 = sphi 0, %s19
    %s33 = sphi 0, %s35
    %s36 = sphi 0, %s33
    %s37 = sphi 0, %s36
    %s53 = sphi 0, %s37
    %s59 = sphi 0, %s61
    %s62 = sphi 0, %s59
    %s63 = sphi 0, %s62
    %s79 = sphi 0, %s63
    %s85 = sphi 0, %s87
    %s88 = sphi 0, %s85
    %s89 = sphi 0, %s88
    %s105 = sphi 0, %s89
    %s113 = sphi 0, %s115
    %s116 = sphi 0, %s113
    %s117 = sphi 0, %s116
    %s133 = sphi 0, %s117
  $region4: #{linear_attention_module.8} parent=0 // loop_header_branch
    %12 = sbr.rel (%p10) target = $region8
  $region5: #{linear_attention_module.8} parent=0 // loop_body
    %s14 = ssub.s32 %s9, 1
    %s15 = ssub.s32 %s9, 2
    %s22 = sadd.s32 1, %s17
    %p23 = scmp.ge.s32.totalorder %s22, 1
    %s24 = scalar_select %p23, 0, %s22
    %s25 = sadd.s32 1, %s16
    %s26 = scalar_select %p23, %s25, %s16
    %p27 = scmp.ge.s32.totalorder %s26, 2
    %s28 = scalar_select %p27, 0, %s26
    %s29 = ssub.s32 %s16, %s28
    %s30 = ssub.s32 %s17, %s24
    %s31 = sor.u32 %s29, %s30
    %p32 = scmp.eq.s32.totalorder %s31, 0
    %s34 = sadd.s32 %s33, 1
    %s35 = scalar_select %p32, %s33, %s34
    %p38 = pneg %p32
    %p39 = scmp.eq.s32.totalorder %s9, 1
    %p40 = por %p38, %p39
    %p41 = scmp.ne.s32.totalorder %s33, %s36
    %p42 = scmp.eq.s32.totalorder %s9, 0
    %p43 = por %p41, %p42
    %p44 = scmp.ne.s32.totalorder %s33, %s36
    %p45 = scmp.eq.s32.totalorder %s14, 1
    %p46 = por %p44, %p45
    %p47 = scmp.ne.s32.totalorder %s36, %s37
    %p48 = scmp.eq.s32.totalorder %s14, 0
    %p49 = por %p47, %p48
    %p50 = scmp.ne.s32.totalorder %s36, %s37
    %p51 = scmp.eq.s32.totalorder %s15, 1
    %p52 = por %p50, %p51
    %p54 = scmp.ne.s32.totalorder %s37, %s53
    %p55 = scmp.eq.s32.totalorder %s15, 0
    %p56 = por %p54, %p55
    %s57 = ssub.s32 %s16, %s28
    %p58 = scmp.eq.s32.totalorder %s57, 0
    %s60 = sadd.s32 %s59, 1
    %s61 = scalar_select %p58, %s59, %s60
    %p64 = pneg %p58
    %p65 = scmp.eq.s32.totalorder %s9, 1
    %p66 = por %p64, %p65
    %p67 = scmp.ne.s32.totalorder %s59, %s62
    %p68 = scmp.eq.s32.totalorder %s9, 0
    %p69 = por %p67, %p68
    %p70 = scmp.ne.s32.totalorder %s59, %s62
    %p71 = scmp.eq.s32.totalorder %s14, 1
    %p72 = por %p70, %p71
    %p73 = scmp.ne.s32.totalorder %s62, %s63
    %p74 = scmp.eq.s32.totalorder %s14, 0
    %p75 = por %p73, %p74
    %p76 = scmp.ne.s32.totalorder %s62, %s63
    %p77 = scmp.eq.s32.totalorder %s15, 1
    %p78 = por %p76, %p77
    %p80 = scmp.ne.s32.totalorder %s63, %s79
    %p81 = scmp.eq.s32.totalorder %s15, 0
    %p82 = por %p80, %p81
    %s83 = ssub.s32 %s16, %s28
    %p84 = scmp.eq.s32.totalorder %s83, 0
    %s86 = sadd.s32 %s85, 1
    %s87 = scalar_select %p84, %s85, %s86
    %p90 = pneg %p84
    %p91 = scmp.eq.s32.totalorder %s9, 1
    %p92 = por %p90, %p91
    %p93 = scmp.ne.s32.totalorder %s85, %s88
    %p94 = scmp.eq.s32.totalorder %s9, 0
    %p95 = por %p93, %p94
    %p96 = scmp.ne.s32.totalorder %s85, %s88
    %p97 = scmp.eq.s32.totalorder %s14, 1
    %p98 = por %p96, %p97
    %p99 = scmp.ne.s32.totalorder %s88, %s89
    %p100 = scmp.eq.s32.totalorder %s14, 0
    %p101 = por %p99, %p100
    %p102 = scmp.ne.s32.totalorder %s88, %s89
    %p103 = scmp.eq.s32.totalorder %s15, 1
    %p104 = por %p102, %p103
    %p106 = scmp.ne.s32.totalorder %s89, %s105
    %p107 = scmp.eq.s32.totalorder %s15, 0
    %p108 = por %p106, %p107
    %s109 = ssub.s32 %s16, %s28
    %s110 = ssub.s32 %s17, %s24
    %s111 = sor.u32 %s109, %s110
    %p112 = scmp.eq.s32.totalorder %s111, 0
    %s114 = sadd.s32 %s113, 1
    %s115 = scalar_select %p112, %s113, %s114
    %p118 = pneg %p112
    %p119 = scmp.eq.s32.totalorder %s9, 1
    %p120 = por %p118, %p119
    %p121 = scmp.ne.s32.totalorder %s113, %s116
    %p122 = scmp.eq.s32.totalorder %s9, 0
    %p123 = por %p121, %p122
    %p124 = scmp.ne.s32.totalorder %s113, %s116
    %p125 = scmp.eq.s32.totalorder %s14, 1
    %p126 = por %p124, %p125
    %p127 = scmp.ne.s32.totalorder %s116, %s117
    %p128 = scmp.eq.s32.totalorder %s14, 0
    %p129 = por %p127, %p128
    %p130 = scmp.ne.s32.totalorder %s116, %s117
    %p131 = scmp.eq.s32.totalorder %s15, 1
    %p132 = por %p130, %p131
    %p134 = scmp.ne.s32.totalorder %s117, %s133
    %p135 = scmp.eq.s32.totalorder %s15, 0
    %p136 = por %p134, %p135
    %p137 = scmp.le.s32.totalorder 1, %s9
    %p138 = scmp.lt.s32.totalorder %s9, 3
    %p139 = pnand %p137, %p138
    %p140 = pneg %p139
    // Predicated region
    $region9: #{linear_attention_module.8} parent=5 // pred_check
      _
    $region10: #{linear_attention_module.8} parent=5 // pred_check_branch
      %142 = sbr.rel (%p139) target = $region12
    $region11: #{linear_attention_module.8} parent=5 // pred_region
      %s143 = ssub.s32 %s9, 1
    $region12: #{linear_attention_module.8} parent=5 // pred_fallthru
      _
    %p144 = scmp.lt.s32.totalorder %s9, 2
    // Predicated region
    $region13: #{linear_attention_module.8} parent=5 // pred_check
      %p145 = pneg %p144
    $region14: #{linear_attention_module.8} parent=5 // pred_check_branch
      %147 = sbr.rel (%p145) target = $region16
    $region15: #{linear_attention_module.8} parent=5 // pred_region
      // Predicated region
      $region17: #{linear_attention_module.8} parent=15 // pred_check
        %p148 = pneg %p43
      $region18: #{linear_attention_module.8} parent=15 // pred_check_branch
        %150 = sbr.rel (%p148) target = $region20
      $region19: #{linear_attention_module.8} parent=15 // pred_region
        %s151 = smul.u32 2, %s17
        %p152 = scmp.lt.s32.totalorder %s16, 1
        %s153 = scalar_select %p152, %s16, 1
        %p154 = scmp.lt.s32.totalorder %s151, 1
        %s155 = scalar_select %p154, %s151, 1
        %s156 = smul.addr %s153, 2
        %s157 = sadd.s32 %s155, %s156
        %s158 = smul.addr %s157, 4
        %s159 = scalar_lea.vmem %s0, %s158
        %s160 = smul.u32 2, %s17
      $region20: #{linear_attention_module.8} parent=15 // pred_fallthru
        _
      // Predicated region
      $region21: #{linear_attention_module.8} parent=15 // pred_check
        %p161 = pneg %p69
      $region22: #{linear_attention_module.8} parent=15 // pred_check_branch
        %163 = sbr.rel (%p161) target = $region24
      $region23: #{linear_attention_module.8} parent=15 // pred_region
        %p164 = scmp.lt.s32.totalorder %s16, 1
        %s165 = scalar_select %p164, %s16, 1
        %s166 = smul.addr %s165, 8
        %s167 = scalar_lea.vmem %s1, %s166
      $region24: #{linear_attention_module.8} parent=15 // pred_fallthru
        _
      // Predicated region
      $region25: #{linear_attention_module.8} parent=15 // pred_check
        %p168 = pneg %p95
      $region26: #{linear_attention_module.8} parent=15 // pred_check_branch
        %170 = sbr.rel (%p168) target = $region28
      $region27: #{linear_attention_module.8} parent=15 // pred_region
        %p171 = scmp.lt.s32.totalorder %s16, 1
        %s172 = scalar_select %p171, %s16, 1
        %s173 = scalar_lea.vmem %s2, %s172
      $region28: #{linear_attention_module.8} parent=15 // pred_fallthru
        _
    $region16: #{linear_attention_module.8} parent=5 // pred_fallthru
      _
    %p174 = scmp.le.s32.totalorder 1, %s9
    %p175 = scmp.lt.s32.totalorder %s9, 3
    %p176 = pnand %p174, %p175
    %p177 = pneg %p176
    // Predicated region
    $region29: #{linear_attention_module.8} parent=5 // pred_check
      _
    $region30: #{linear_attention_module.8} parent=5 // pred_check_branch
      %179 = sbr.rel (%p176) target = $region32
    $region31: #{linear_attention_module.8} parent=5 // pred_region
      %s180 = ssub.s32 %s9, 1
      %s181 = smul.u32 2, %s19
      %p182 = scmp.lt.s32.totalorder %s18, 1
      %s183 = scalar_select %p182, %s18, 1
      %p184 = scmp.lt.s32.totalorder %s181, 1
      %s185 = scalar_select %p184, %s181, 1
      %s186 = smul.addr %s183, 2
      %s187 = sadd.s32 %s185, %s186
      %s188 = smul.addr %s187, 4
      %s189 = scalar_lea.vmem %s0, %s188
      %p190 = pneg %p49
      %p191 = pneg %p46
      %p192 = scmp.lt.s32.totalorder %s18, 1
      %s193 = scalar_select %p192, %s18, 1
      %s194 = smul.addr %s193, 8
      %s195 = scalar_lea.vmem %s1, %s194
      %p196 = pneg %p75
      %p197 = pneg %p72
      %p198 = scmp.lt.s32.totalorder %s18, 1
      %s199 = scalar_select %p198, %s18, 1
      %s200 = scalar_lea.vmem %s2, %s199
      %p201 = pneg %p101
      %p202 = pneg %p98
      %p203 = pneg %p129
      %p204 = pneg %p126
      %s205 = smul.u32 2, %s19
      %p206 = scmp.lt.s32.totalorder %s18, 1
      %s207 = scalar_select %p206, %s18, 1
      %p208 = scmp.lt.s32.totalorder %s205, 1
      %s209 = scalar_select %p208, %s205, 1
      %s210 = smul.addr %s207, 2
      %s211 = sadd.s32 %s209, %s210
      %s212 = smul.addr %s211, 4
      %s213 = scalar_lea.vmem %s3, %s212
      %s214 = smul.u32 2, %s19
      %p215 = scmp.lt.s32.totalorder %s18, 1
      %s216 = scalar_select %p215, %s18, 1
      %p217 = scmp.lt.s32.totalorder %s214, 1
      %s218 = scalar_select %p217, %s214, 1
      %s219 = smul.addr %s216, 2
      %s220 = sadd.s32 %s218, %s219
      %s221 = smul.addr %s220, 4
      %s222 = scalar_lea.vmem %s0, %s221
      %s223 = smul.u32 2, %s19
      %p224 = scmp.lt.s32.totalorder %s18, 1
      %s225 = scalar_select %p224, %s18, 1
      %s226 = smul.addr %s225, 8
      %s227 = scalar_lea.vmem %s1, %s226
      %p228 = scmp.lt.s32.totalorder %s18, 1
      %s229 = scalar_select %p228, %s18, 1
      %s230 = scalar_lea.vmem %s2, %s229
      %s231 = smul.u32 2, %s19
      %p232 = scmp.lt.s32.totalorder %s18, 1
      %s233 = scalar_select %p232, %s18, 1
      %p234 = scmp.lt.s32.totalorder %s231, 1
      %s235 = scalar_select %p234, %s231, 1
      %s236 = smul.addr %s233, 2
      %s237 = sadd.s32 %s235, %s236
      %s238 = smul.addr %s237, 4
      %s239 = scalar_lea.vmem %s3, %s238
      %s240 = smul.u32 2, %s19
      %v241 = vld [vmem:[%s222] sm:$0xf]
      %v242 = vld [vmem:[%s222 + $0x4] sm:$0xf]
      %v243 = vunpack.c.l.bf16 %v241
      %v244 = vunpack.c.l.bf16 %v242
      %vm245 = vcmp.gt.f32.partialorder %v243, 0.0
      %vm246 = vcmp.gt.f32.partialorder %v244, 0.0
      %v247 = vadd.f32 %v243, 1.0
      %v248 = vadd.f32 %v244, 1.0
      %v249 = vmul.f32 %v243, 1.442695
      %v250 = vpow.pop %v249
      %v251 = vmul.f32 %v244, 1.442695
      %v252 = vpow.pop %v251
      %v253 = vsel %vm245, %v247, %v250
      %v254 = vsel %vm246, %v248, %v252
      %v255 = vld [vmem:[%s227] sm:$0xff]
      %v256 = vld [vmem:[%s230] sm:$0x1]
      %vm257 = vcmask 64512
      %v259 = vsel %vm257, %v253, 0
      %v262 = vsel %vm257, %v254, 0
      %264 = vmatprep.subr.mxu0 0.0
      %265 = vmatpush1.msra.mxu0 %v255
      %266 = vmatprep.subr.mxu0 0.0
      %267 = vmatpush1.msra.mxu0 0.0
      %268 = vmatprep.subr.mxu0 0.0
      %269 = vmatpush1.msra.mxu0 0.0
      %270 = vmatprep.subr.mxu0 0.0
      %271 = vmatpush1.msra.mxu0 0.0
      %272 = vmatprep.subr.mxu0 0.0
      %273 = vmatpush1.msra.mxu0 0.0
      %274 = vmatprep.subr.mxu0 0.0
      %275 = vmatpush1.msra.mxu0 0.0
      %276 = vmatprep.subr.mxu0 0.0
      %277 = vmatpush1.msra.mxu0 0.0
      %278 = vmatprep.subr.mxu0 0.0
      %279 = vmatpush1.msra.mxu0 0.0
      %280 = vmatprep.subr.mxu0 0.0
      %281 = vmatpush1.msra.mxu0 0.0
      %282 = vmatprep.subr.mxu0 0.0
      %283 = vmatpush1.msra.mxu0 0.0
      %284 = vmatprep.subr.mxu0 0.0
      %285 = vmatpush1.msra.mxu0 0.0
      %286 = vmatprep.subr.mxu0 0.0
      %287 = vmatpush1.msra.mxu0 0.0
      %288 = vmatprep.subr.mxu0 0.0
      %289 = vmatpush1.msra.mxu0 0.0
      %290 = vmatprep.subr.mxu0 0.0
      %291 = vmatpush1.msra.mxu0 0.0
      %292 = vmatprep.subr.mxu0 0.0
      %293 = vmatpush1.msra.mxu0 0.0
      %294 = vmatprep.subr.mxu0 0.0
      %295 = vmatpush1.msra.mxu0 0.0
      %296 = vmatprep.subr.mxu0 0.0
      %297 = vmatpush1.msra.mxu0 0.0
      %298 = vmatprep.subr.mxu0 0.0
      %299 = vmatpush1.msra.mxu0 0.0
      %300 = vmatprep.subr.mxu0 0.0
      %301 = vmatpush1.msra.mxu0 0.0
      %302 = vmatprep.subr.mxu0 0.0
      %303 = vmatpush1.msra.mxu0 0.0
      %304 = vmatprep.subr.mxu0 0.0
      %305 = vmatpush1.msra.mxu0 0.0
      %306 = vmatprep.subr.mxu0 0.0
      %307 = vmatpush1.msra.mxu0 0.0
      %308 = vmatprep.subr.mxu0 0.0
      %309 = vmatpush1.msra.mxu0 0.0
      %310 = vmatprep.subr.mxu0 0.0
      %311 = vmatpush1.msra.mxu0 0.0
      %312 = vmatprep.subr.mxu0 0.0
      %313 = vmatpush1.msra.mxu0 0.0
      %314 = vmatprep.subr.mxu0 0.0
      %315 = vmatpush1.msra.mxu0 0.0
      %316 = vmatprep.subr.mxu0 0.0
      %317 = vmatpush1.msra.mxu0 0.0
      %318 = vmatprep.subr.mxu0 0.0
      %319 = vmatpush1.msra.mxu0 0.0
      %320 = vmatprep.subr.mxu0 0.0
      %321 = vmatpush1.msra.mxu0 0.0
      %322 = vmatprep.subr.mxu0 0.0
      %323 = vmatpush1.msra.mxu0 0.0
      %324 = vmatprep.subr.mxu0 0.0
      %325 = vmatpush1.msra.mxu0 0.0
      %326 = vmatprep.subr.mxu0 0.0
      %327 = vmatpush1.msra.mxu0 0.0
      %328 = vmatprep.mubr.f32.mxu0 0.0
      %329 = vmatmul.mubr.f32.gmra.mrb[0].mxu0 %v259
      %v330 = vpop.f32.mrb[0].mxu0
      %v331 = vadd.f32 0.0, %v330
      %v332 = vpop.f32.mrb[0].mxu0
      %333 = vmatprep.mubr.f32.mxu0 0.0
      %334 = vmatmul.mubr.f32.gmra.mrb[0].mxu0 %v262
      %v335 = vpop.f32.mrb[0].mxu0
      %v336 = vadd.f32 0.0, %v335
      %v337 = vpop.f32.mrb[0].mxu0
      %338 = vdwg.mxu0
      %v340 = vlaneseq
      %v341 = vshrl.u32 %v340, 7
      %v342 = vsub.s32 0, %v341
      %v343 = vrot.slane %v256, %v342
      %v345 = vmul.f32 %v253, %v343
      %v346 = vmul.f32 %v254, %v343
      %v347 = vsel %vm257, %v345, 0.0
      %348 = vadd.xlane.f32.xlu0 %v347
      %v349 = vpop.xlane.xlu0 %348
      %v350 = vsel %vm257, %v346, 0.0
      %351 = vadd.xlane.f32.xlu0 %v350
      %v352 = vpop.xlane.xlu0 %351
      %v353 = vadd.f32 %v349, 1e-06
      %v354 = vadd.f32 %v352, 1e-06
      %v355 = vrcp.pop %v353
      %v356 = vmul.f32 %v331, %v355
      %v357 = vrcp.pop %v354
      %v358 = vmul.f32 %v336, %v357
      %359 = vrot.lane.b32.xlu0 %v253, 120
      %v360 = vpop.permute.xlu0 %359
      %361 = vrot.lane.b32.xlu0 %v254, 120
      %v362 = vpop.permute.xlu0 %361
      %364 = vrot.lane.b32.xlu0 %v255, 120
      %v365 = vpop.permute.xlu0 %364
      %v367 = vsel %vm257, %v360, 0
      %v369 = vsel %vm257, %v362, 0
      %371 = vmatprep.subr.mxu0 0.0
      %372 = vmatpush1.msra.mxu0 %v365
      %373 = vmatprep.subr.mxu0 0.0
      %374 = vmatpush1.msra.mxu0 0.0
      %375 = vmatprep.subr.mxu0 0.0
      %376 = vmatpush1.msra.mxu0 0.0
      %377 = vmatprep.subr.mxu0 0.0
      %378 = vmatpush1.msra.mxu0 0.0
      %379 = vmatprep.subr.mxu0 0.0
      %380 = vmatpush1.msra.mxu0 0.0
      %381 = vmatprep.subr.mxu0 0.0
      %382 = vmatpush1.msra.mxu0 0.0
      %383 = vmatprep.subr.mxu0 0.0
      %384 = vmatpush1.msra.mxu0 0.0
      %385 = vmatprep.subr.mxu0 0.0
      %386 = vmatpush1.msra.mxu0 0.0
      %387 = vmatprep.subr.mxu0 0.0
      %388 = vmatpush1.msra.mxu0 0.0
      %389 = vmatprep.subr.mxu0 0.0
      %390 = vmatpush1.msra.mxu0 0.0
      %391 = vmatprep.subr.mxu0 0.0
      %392 = vmatpush1.msra.mxu0 0.0
      %393 = vmatprep.subr.mxu0 0.0
      %394 = vmatpush1.msra.mxu0 0.0
      %395 = vmatprep.subr.mxu0 0.0
      %396 = vmatpush1.msra.mxu0 0.0
      %397 = vmatprep.subr.mxu0 0.0
      %398 = vmatpush1.msra.mxu0 0.0
      %399 = vmatprep.subr.mxu0 0.0
      %400 = vmatpush1.msra.mxu0 0.0
      %401 = vmatprep.subr.mxu0 0.0
      %402 = vmatpush1.msra.mxu0 0.0
      %403 = vmatprep.subr.mxu0 0.0
      %404 = vmatpush1.msra.mxu0 0.0
      %405 = vmatprep.subr.mxu0 0.0
      %406 = vmatpush1.msra.mxu0 0.0
      %407 = vmatprep.subr.mxu0 0.0
      %408 = vmatpush1.msra.mxu0 0.0
      %409 = vmatprep.subr.mxu0 0.0
      %410 = vmatpush1.msra.mxu0 0.0
      %411 = vmatprep.subr.mxu0 0.0
      %412 = vmatpush1.msra.mxu0 0.0
      %413 = vmatprep.subr.mxu0 0.0
      %414 = vmatpush1.msra.mxu0 0.0
      %415 = vmatprep.subr.mxu0 0.0
      %416 = vmatpush1.msra.mxu0 0.0
      %417 = vmatprep.subr.mxu0 0.0
      %418 = vmatpush1.msra.mxu0 0.0
      %419 = vmatprep.subr.mxu0 0.0
      %420 = vmatpush1.msra.mxu0 0.0
      %421 = vmatprep.subr.mxu0 0.0
      %422 = vmatpush1.msra.mxu0 0.0
      %423 = vmatprep.subr.mxu0 0.0
      %424 = vmatpush1.msra.mxu0 0.0
      %425 = vmatprep.subr.mxu0 0.0
      %426 = vmatpush1.msra.mxu0 0.0
      %427 = vmatprep.subr.mxu0 0.0
      %428 = vmatpush1.msra.mxu0 0.0
      %429 = vmatprep.subr.mxu0 0.0
      %430 = vmatpush1.msra.mxu0 0.0
      %431 = vmatprep.subr.mxu0 0.0
      %432 = vmatpush1.msra.mxu0 0.0
      %433 = vmatprep.subr.mxu0 0.0
      %434 = vmatpush1.msra.mxu0 0.0
      %435 = vmatprep.mubr.f32.mxu0 0.0
      %436 = vmatmul.mubr.f32.gmra.mrb[0].mxu0 %v367
      %v437 = vpop.f32.mrb[0].mxu0
      %v438 = vadd.f32 0.0, %v437
      %v439 = vpop.f32.mrb[0].mxu0
      %440 = vmatprep.mubr.f32.mxu0 0.0
      %441 = vmatmul.mubr.f32.gmra.mrb[0].mxu0 %v369
      %v442 = vpop.f32.mrb[0].mxu0
      %v443 = vadd.f32 0.0, %v442
      %v444 = vpop.f32.mrb[0].mxu0
      %445 = vdwg.mxu0
      %448 = vrot.lane.b32.xlu0 %v345, 120
      %v449 = vpop.permute.xlu0 %448
      %450 = vrot.lane.b32.xlu0 %v346, 120
      %v451 = vpop.permute.xlu0 %450
      %v454 = vsel %vm257, %v449, 0.0
      %455 = vadd.xlane.f32.xlu0 %v454
      %v456 = vpop.xlane.xlu0 %455
      %v457 = vsel %vm257, %v451, 0.0
      %458 = vadd.xlane.f32.xlu0 %v457
      %v459 = vpop.xlane.xlu0 %458
      %v460 = vadd.f32 %v456, 1e-06
      %v461 = vadd.f32 %v459, 1e-06
      %v462 = vrcp.pop %v460
      %v463 = vmul.f32 %v438, %v462
      %v464 = vrcp.pop %v461
      %v465 = vmul.f32 %v443, %v464
      %466 = vrot.lane.b32.xlu0 %v253, 112
      %v467 = vpop.permute.xlu0 %466
      %468 = vrot.lane.b32.xlu0 %v254, 112
      %v469 = vpop.permute.xlu0 %468
      %470 = vrot.lane.b32.xlu0 %v255, 112
      %v471 = vpop.permute.xlu0 %470
      %v473 = vsel %vm257, %v467, 0
      %v475 = vsel %vm257, %v469, 0
      %477 = vmatprep.subr.mxu0 0.0
      %478 = vmatpush1.msra.mxu0 %v471
      %479 = vmatprep.subr.mxu0 0.0
      %480 = vmatpush1.msra.mxu0 0.0
      %481 = vmatprep.subr.mxu0 0.0
      %482 = vmatpush1.msra.mxu0 0.0
      %483 = vmatprep.subr.mxu0 0.0
      %484 = vmatpush1.msra.mxu0 0.0
      %485 = vmatprep.subr.mxu0 0.0
      %486 = vmatpush1.msra.mxu0 0.0
      %487 = vmatprep.subr.mxu0 0.0
      %488 = vmatpush1.msra.mxu0 0.0
      %489 = vmatprep.subr.mxu0 0.0
      %490 = vmatpush1.msra.mxu0 0.0
      %491 = vmatprep.subr.mxu0 0.0
      %492 = vmatpush1.msra.mxu0 0.0
      %493 = vmatprep.subr.mxu0 0.0
      %494 = vmatpush1.msra.mxu0 0.0
      %495 = vmatprep.subr.mxu0 0.0
      %496 = vmatpush1.msra.mxu0 0.0
      %497 = vmatprep.subr.mxu0 0.0
      %498 = vmatpush1.msra.mxu0 0.0
      %499 = vmatprep.subr.mxu0 0.0
      %500 = vmatpush1.msra.mxu0 0.0
      %501 = vmatprep.subr.mxu0 0.0
      %502 = vmatpush1.msra.mxu0 0.0
      %503 = vmatprep.subr.mxu0 0.0
      %504 = vmatpush1.msra.mxu0 0.0
      %505 = vmatprep.subr.mxu0 0.0
      %506 = vmatpush1.msra.mxu0 0.0
      %507 = vmatprep.subr.mxu0 0.0
      %508 = vmatpush1.msra.mxu0 0.0
      %509 = vmatprep.subr.mxu0 0.0
      %510 = vmatpush1.msra.mxu0 0.0
      %511 = vmatprep.subr.mxu0 0.0
      %512 = vmatpush1.msra.mxu0 0.0
      %513 = vmatprep.subr.mxu0 0.0
      %514 = vmatpush1.msra.mxu0 0.0
      %515 = vmatprep.subr.mxu0 0.0
      %516 = vmatpush1.msra.mxu0 0.0
      %517 = vmatprep.subr.mxu0 0.0
      %518 = vmatpush1.msra.mxu0 0.0
      %519 = vmatprep.subr.mxu0 0.0
      %520 = vmatpush1.msra.mxu0 0.0
      %521 = vmatprep.subr.mxu0 0.0
      %522 = vmatpush1.msra.mxu0 0.0
      %523 = vmatprep.subr.mxu0 0.0
      %524 = vmatpush1.msra.mxu0 0.0
      %525 = vmatprep.subr.mxu0 0.0
      %526 = vmatpush1.msra.mxu0 0.0
      %527 = vmatprep.subr.mxu0 0.0
      %528 = vmatpush1.msra.mxu0 0.0
      %529 = vmatprep.subr.mxu0 0.0
      %530 = vmatpush1.msra.mxu0 0.0
      %531 = vmatprep.subr.mxu0 0.0
      %532 = vmatpush1.msra.mxu0 0.0
      %533 = vmatprep.subr.mxu0 0.0
      %534 = vmatpush1.msra.mxu0 0.0
      %535 = vmatprep.subr.mxu0 0.0
      %536 = vmatpush1.msra.mxu0 0.0
      %537 = vmatprep.subr.mxu0 0.0
      %538 = vmatpush1.msra.mxu0 0.0
      %539 = vmatprep.subr.mxu0 0.0
      %540 = vmatpush1.msra.mxu0 0.0
      %541 = vmatprep.mubr.f32.mxu0 0.0
      %542 = vmatmul.mubr.f32.gmra.mrb[0].mxu0 %v473
      %v543 = vpop.f32.mrb[0].mxu0
      %v544 = vadd.f32 0.0, %v543
      %v545 = vpop.f32.mrb[0].mxu0
      %546 = vmatprep.mubr.f32.mxu0 0.0
      %547 = vmatmul.mubr.f32.gmra.mrb[0].mxu0 %v475
      %v548 = vpop.f32.mrb[0].mxu0
      %v549 = vadd.f32 0.0, %v548
      %v550 = vpop.f32.mrb[0].mxu0
      %551 = vdwg.mxu0
      %552 = vrot.lane.b32.xlu0 %v345, 112
      %v553 = vpop.permute.xlu0 %552
      %554 = vrot.lane.b32.xlu0 %v346, 112
      %v555 = vpop.permute.xlu0 %554
      %v558 = vsel %vm257, %v553, 0.0
      %559 = vadd.xlane.f32.xlu0 %v558
      %v560 = vpop.xlane.xlu0 %559
      %v561 = vsel %vm257, %v555, 0.0
      %562 = vadd.xlane.f32.xlu0 %v561
      %v563 = vpop.xlane.xlu0 %562
      %v564 = vadd.f32 %v560, 1e-06
      %v565 = vadd.f32 %v563, 1e-06
      %v566 = vrcp.pop %v564
      %v567 = vmul.f32 %v544, %v566
      %v568 = vrcp.pop %v565
      %v569 = vmul.f32 %v549, %v568
      %570 = vrot.lane.b32.xlu0 %v253, 104
      %v571 = vpop.permute.xlu0 %570
      %572 = vrot.lane.b32.xlu0 %v254, 104
      %v573 = vpop.permute.xlu0 %572
      %574 = vrot.lane.b32.xlu0 %v255, 104
      %v575 = vpop.permute.xlu0 %574
      %v577 = vsel %vm257, %v571, 0
      %v579 = vsel %vm257, %v573, 0
      %581 = vmatprep.subr.mxu0 0.0
      %582 = vmatpush1.msra.mxu0 %v575
      %583 = vmatprep.subr.mxu0 0.0
      %584 = vmatpush1.msra.mxu0 0.0
      %585 = vmatprep.subr.mxu0 0.0
      %586 = vmatpush1.msra.mxu0 0.0
      %587 = vmatprep.subr.mxu0 0.0
      %588 = vmatpush1.msra.mxu0 0.0
      %589 = vmatprep.subr.mxu0 0.0
      %590 = vmatpush1.msra.mxu0 0.0
      %591 = vmatprep.subr.mxu0 0.0
      %592 = vmatpush1.msra.mxu0 0.0
      %593 = vmatprep.subr.mxu0 0.0
      %594 = vmatpush1.msra.mxu0 0.0
      %595 = vmatprep.subr.mxu0 0.0
      %596 = vmatpush1.msra.mxu0 0.0
      %597 = vmatprep.subr.mxu0 0.0
      %598 = vmatpush1.msra.mxu0 0.0
      %599 = vmatprep.subr.mxu0 0.0
      %600 = vmatpush1.msra.mxu0 0.0
      %601 = vmatprep.subr.mxu0 0.0
      %602 = vmatpush1.msra.mxu0 0.0
      %603 = vmatprep.subr.mxu0 0.0
      %604 = vmatpush1.msra.mxu0 0.0
      %605 = vmatprep.subr.mxu0 0.0
      %606 = vmatpush1.msra.mxu0 0.0
      %607 = vmatprep.subr.mxu0 0.0
      %608 = vmatpush1.msra.mxu0 0.0
      %609 = vmatprep.subr.mxu0 0.0
      %610 = vmatpush1.msra.mxu0 0.0
      %611 = vmatprep.subr.mxu0 0.0
      %612 = vmatpush1.msra.mxu0 0.0
      %613 = vmatprep.subr.mxu0 0.0
      %614 = vmatpush1.msra.mxu0 0.0
      %615 = vmatprep.subr.mxu0 0.0
      %616 = vmatpush1.msra.mxu0 0.0
      %617 = vmatprep.subr.mxu0 0.0
      %618 = vmatpush1.msra.mxu0 0.0
      %619 = vmatprep.subr.mxu0 0.0
      %620 = vmatpush1.msra.mxu0 0.0
      %621 = vmatprep.subr.mxu0 0.0
      %622 = vmatpush1.msra.mxu0 0.0
      %623 = vmatprep.subr.mxu0 0.0
      %624 = vmatpush1.msra.mxu0 0.0
      %625 = vmatprep.subr.mxu0 0.0
      %626 = vmatpush1.msra.mxu0 0.0
      %627 = vmatprep.subr.mxu0 0.0
      %628 = vmatpush1.msra.mxu0 0.0
      %629 = vmatprep.subr.mxu0 0.0
      %630 = vmatpush1.msra.mxu0 0.0
      %631 = vmatprep.subr.mxu0 0.0
      %632 = vmatpush1.msra.mxu0 0.0
      %633 = vmatprep.subr.mxu0 0.0
      %634 = vmatpush1.msra.mxu0 0.0
      %635 = vmatprep.subr.mxu0 0.0
      %636 = vmatpush1.msra.mxu0 0.0
      %637 = vmatprep.subr.mxu0 0.0
      %638 = vmatpush1.msra.mxu0 0.0
      %639 = vmatprep.subr.mxu0 0.0
      %640 = vmatpush1.msra.mxu0 0.0
      %641 = vmatprep.subr.mxu0 0.0
      %642 = vmatpush1.msra.mxu0 0.0
      %643 = vmatprep.subr.mxu0 0.0
      %644 = vmatpush1.msra.mxu0 0.0
      %645 = vmatprep.mubr.f32.mxu0 0.0
      %646 = vmatmul.mubr.f32.gmra.mrb[0].mxu0 %v577
      %v647 = vpop.f32.mrb[0].mxu0
      %v648 = vadd.f32 0.0, %v647
      %v649 = vpop.f32.mrb[0].mxu0
      %650 = vmatprep.mubr.f32.mxu0 0.0
      %651 = vmatmul.mubr.f32.gmra.mrb[0].mxu0 %v579
      %v652 = vpop.f32.mrb[0].mxu0
      %v653 = vadd.f32 0.0, %v652
      %v654 = vpop.f32.mrb[0].mxu0
      %655 = vdwg.mxu0
      %656 = vrot.lane.b32.xlu0 %v345, 104
      %v657 = vpop.permute.xlu0 %656
      %658 = vrot.lane.b32.xlu0 %v346, 104
      %v659 = vpop.permute.xlu0 %658
      %v662 = vsel %vm257, %v657, 0.0
      %663 = vadd.xlane.f32.xlu0 %v662
      %v664 = vpop.xlane.xlu0 %663
      %v665 = vsel %vm257, %v659, 0.0
      %666 = vadd.xlane.f32.xlu0 %v665
      %v667 = vpop.xlane.xlu0 %666
      %v668 = vadd.f32 %v664, 1e-06
      %v669 = vadd.f32 %v667, 1e-06
      %v670 = vrcp.pop %v668
      %v671 = vmul.f32 %v648, %v670
      %v672 = vrcp.pop %v669
      %v673 = vmul.f32 %v653, %v672
      %676 = vrot.lane.b32.xlu0 %v463, 8
      %v677 = vpop.permute.xlu0 %676
      %678 = vrot.lane.b32.xlu0 %v465, 8
      %v679 = vpop.permute.xlu0 %678
      %684 = vrot.lane.b32.xlu0 %v567, 16
      %v685 = vpop.permute.xlu0 %684
      %686 = vrot.lane.b32.xlu0 %v569, 16
      %v687 = vpop.permute.xlu0 %686
      %692 = vrot.lane.b32.xlu0 %v671, 24
      %v693 = vpop.permute.xlu0 %692
      %694 = vrot.lane.b32.xlu0 %v673, 24
      %v695 = vpop.permute.xlu0 %694
      %v698 = vsel %vm257, %v356, %v677
      %v699 = vsel %vm257, %v358, %v679
      %vm700 = vcmask 130048
      %v701 = vsel %vm700, %v698, %v685
      %v702 = vsel %vm700, %v699, %v687
      %vm703 = vcmask 195584
      %v704 = vsel %vm703, %v701, %v693
      %v705 = vsel %vm703, %v702, %v695
      %v706 = vpack.c.bf16 %v705, %v704
      %v708 = vunpack.c.l.b16 %v706
      %v709 = vunpack.c.h.b16 %v706
      %v710 = vpack.c.b16 %v708, %v708
      %v711 = vpack.c.b16 %v709, %v709
      %vm714 = vcmask 257024
      %715 = vst.msk [vmem:[%s239] sm:$0xf] %vm714, %v710
      %716 = vst.msk [vmem:[%s239 + $0x4] sm:$0xf] %vm714, %v711
      %s717 = smul.u32 2, %s19
      %p718 = scmp.lt.s32.totalorder %s18, 1
      %s719 = scalar_select %p718, %s18, 1
      %p720 = scmp.lt.s32.totalorder %s717, 1
      %s721 = scalar_select %p720, %s717, 1
      %s722 = smul.addr %s719, 2
      %s723 = sadd.s32 %s721, %s722
      %s724 = smul.addr %s723, 4
      %s725 = scalar_lea.vmem %s3, %s724
      // Predicated region
      $region33: #{linear_attention_module.8} parent=31 // pred_check
        %p726 = pneg %p126
      $region34: #{linear_attention_module.8} parent=31 // pred_check_branch
        %728 = sbr.rel (%p726) target = $region36
      $region35: #{linear_attention_module.8} parent=31 // pred_region
        %s729 = smul.u32 2, %s19
      $region36: #{linear_attention_module.8} parent=31 // pred_fallthru
        _
    $region32: #{linear_attention_module.8} parent=5 // pred_fallthru
      _
    %p730 = scmp.le.s32.totalorder 2, %s9
    // Predicated region
    $region37: #{linear_attention_module.8} parent=5 // pred_check
      %p731 = pneg %p730
    $region38: #{linear_attention_module.8} parent=5 // pred_check_branch
      %733 = sbr.rel (%p731) target = $region40
    $region39: #{linear_attention_module.8} parent=5 // pred_region
      %s734 = ssub.s32 %s9, 2
      // Predicated region
      $region41: #{linear_attention_module.8} parent=39 // pred_check
        %p735 = pneg %p132
      $region42: #{linear_attention_module.8} parent=39 // pred_check_branch
        %737 = sbr.rel (%p735) target = $region44
      $region43: #{linear_attention_module.8} parent=39 // pred_region
        %s738 = smul.u32 2, %s21
        %p739 = scmp.lt.s32.totalorder %s20, 1
        %s740 = scalar_select %p739, %s20, 1
        %p741 = scmp.lt.s32.totalorder %s738, 1
        %s742 = scalar_select %p741, %s738, 1
        %s743 = smul.addr %s740, 2
        %s744 = sadd.s32 %s742, %s743
        %s745 = smul.addr %s744, 4
        %s746 = scalar_lea.vmem %s3, %s745
      $region44: #{linear_attention_module.8} parent=39 // pred_fallthru
        _
    $region40: #{linear_attention_module.8} parent=5 // pred_fallthru
      _
  $region6: #{linear_attention_module.8} parent=0 // loop_footer
    %s13 = sadd.s32 1, %s9
  $region7: #{linear_attention_module.8} parent=0 // loop_footer_branch
    %8 = sbr.rel target = $region3
  $region8: #{linear_attention_module.8} parent=0 // loop_exit
    _

// kernel: linear_attention_module.5
$region0: #{linear_attention_module.5}
  #allocation0 [shape = 'u32[]', space=smem, size = 0x4, offset = 0x4, fixed_abs, tag = 'smem constant byte address 0x4 - core index']
  #allocation1 [shape = 'u32[144,128]{1,0:T(1,128)}', space=vmem, size = 0x12000, scoped, tag = 'internal scratch']
  #allocation2 [shape = 'f32[32,32]{1,0:T(8,128)}', space=vmem, size = 0x4000, scoped, tag = 'scratch operand']
  %s0 = inlined_call_operand.vmem [shape: f32[32,32], index: 0, kind: input, shape index: {}]
  %s1 = inlined_call_operand.vmem [shape: bf16[32,32], index: 1, kind: input, shape index: {}]
  %s2 = inlined_call_operand.vmem [shape: bf16[32,32], index: 2, kind: output, shape index: {}]
  %s3 = sld [smem:[#allocation0]]
  $region26: #{linear_attention_module.5} parent=0
    _
  %s5 = ssub.s32 1, %s3
  %s6 = scalar_select 0, %s5, %s3
  // Predicated region
  $region2: #{linear_attention_module.5} parent=0 // pred_check
    _
  $region3: #{linear_attention_module.5} parent=0 // pred_check_branch
    %8 = sbr.rel (0) target = $region5
  $region4: #{linear_attention_module.5} parent=0 // pred_region
    _
  $region5: #{linear_attention_module.5} parent=0 // pred_fallthru
    _
  // Predicated region
  $region6: #{linear_attention_module.5} parent=0 // pred_check
    _
  $region7: #{linear_attention_module.5} parent=0 // pred_check_branch
    %10 = sbr.rel (0) target = $region9
  $region8: #{linear_attention_module.5} parent=0 // pred_region
    _
  $region9: #{linear_attention_module.5} parent=0 // pred_fallthru
    _
  %p12 = scmp.eq.s32.totalorder 0, 0
  // Predicated region
  $region10: #{linear_attention_module.5} parent=0 // pred_check
    %p13 = pneg %p12
  $region11: #{linear_attention_module.5} parent=0 // pred_check_branch
    %15 = sbr.rel (%p13) target = $region13
  $region12: #{linear_attention_module.5} parent=0 // pred_region
    %vm16 = vcmask 261120
    %17 = vst.msk [vmem:[#allocation2] sm:$0xff] %vm16, 0.0
    %18 = vst.msk [vmem:[#allocation2 + $0x8] sm:$0xff] %vm16, 0.0
    %19 = vst.msk [vmem:[#allocation2 + $0x10] sm:$0xff] %vm16, 0.0
    %20 = vst.msk [vmem:[#allocation2 + $0x18] sm:$0xff] %vm16, 0.0
  $region13: #{linear_attention_module.5} parent=0 // pred_fallthru
    _
  %v21 = vld [vmem:[#allocation2] sm:$0xff]
  %v22 = vld [vmem:[#allocation2 + $0x8] sm:$0xff]
  %v23 = vld [vmem:[#allocation2 + $0x10] sm:$0xff]
  %v24 = vld [vmem:[#allocation2 + $0x18] sm:$0xff]
  %v25 = vld [vmem:[%s0] sm:$0xff]
  %v26 = vld [vmem:[%s0 + $0x8] sm:$0xff]
  %v27 = vld [vmem:[%s0 + $0x10] sm:$0xff]
  %v28 = vld [vmem:[%s0 + $0x18] sm:$0xff]
  %v29 = vpack.c.bf16 %v26, %v25
  %v30 = vpack.c.bf16 %v28, %v27
  %v31 = vld [vmem:[%s1] sm:$0xf]
  %v32 = vld [vmem:[%s1 + $0x4] sm:$0xf]
  %v33 = vld [vmem:[%s1 + $0x8] sm:$0xf]
  %v34 = vld [vmem:[%s1 + $0xc] sm:$0xf]
  %v39 = vunpack.c.l.b16 %v31
  %v40 = vunpack.c.l.b16 %v32
  %v41 = vunpack.c.l.b16 %v33
  %v42 = vunpack.c.l.b16 %v34
  %v43 = vpack.c.b16 %v40, %v39
  %v44 = vpack.c.b16 %v42, %v41
  %vm47 = vcmask 261120
  %v49 = vsel %vm47, %v29, 0
  %v52 = vsel %vm47, %v30, 0
  %54 = vmatprep.subr.bf16.mxu0 0
  %55 = vmatpush1.bf16.msra.mxu0 %v43
  %56 = vmatprep.subr.bf16.mxu0 0
  %57 = vmatpush1.bf16.msra.mxu0 %v44
  %58 = vmatprep.subr.bf16.mxu0 0
  %59 = vmatpush1.bf16.msra.mxu0 0
  %60 = vmatprep.subr.bf16.mxu0 0
  %61 = vmatpush1.bf16.msra.mxu0 0
  %62 = vmatprep.subr.bf16.mxu0 0
  %63 = vmatpush1.bf16.msra.mxu0 0
  %64 = vmatprep.subr.bf16.mxu0 0
  %65 = vmatpush1.bf16.msra.mxu0 0
  %66 = vmatprep.subr.bf16.mxu0 0
  %67 = vmatpush1.bf16.msra.mxu0 0
  %68 = vmatprep.subr.bf16.mxu0 0
  %69 = vmatpush1.bf16.msra.mxu0 0
  %70 = vmatprep.subr.bf16.mxu0 0
  %71 = vmatpush1.bf16.msra.mxu0 0
  %72 = vmatprep.subr.bf16.mxu0 0
  %73 = vmatpush1.bf16.msra.mxu0 0
  %74 = vmatprep.subr.bf16.mxu0 0
  %75 = vmatpush1.bf16.msra.mxu0 0
  %76 = vmatprep.subr.bf16.mxu0 0
  %77 = vmatpush1.bf16.msra.mxu0 0
  %78 = vmatprep.subr.bf16.mxu0 0
  %79 = vmatpush1.bf16.msra.mxu0 0
  %80 = vmatprep.subr.bf16.mxu0 0
  %81 = vmatpush1.bf16.msra.mxu0 0
  %82 = vmatprep.subr.bf16.mxu0 0
  %83 = vmatpush1.bf16.msra.mxu0 0
  %84 = vmatprep.subr.bf16.mxu0 0
  %85 = vmatpush1.bf16.msra.mxu0 0
  %86 = vmatprep.mubr.bf16.mxu0 0
  %87 = vmatmul.mubr.bf16.gmra.mrb[0].mxu0 %v49
  %v88 = vpop.f32.mrb[0].mxu0
  %v89 = vadd.f32 0.0, %v88
  %v90 = vpop.f32.mrb[0].mxu0
  %v91 = vpop.f32.mrb[0].mxu0
  %v92 = vadd.f32 0.0, %v91
  %v93 = vpop.f32.mrb[0].mxu0
  %94 = vmatprep.mubr.bf16.mxu0 0
  %95 = vmatmul.mubr.bf16.gmra.mrb[0].mxu0 %v52
  %v96 = vpop.f32.mrb[0].mxu0
  %v97 = vadd.f32 0.0, %v96
  %v98 = vpop.f32.mrb[0].mxu0
  %v99 = vpop.f32.mrb[0].mxu0
  %v100 = vadd.f32 0.0, %v99
  %v101 = vpop.f32.mrb[0].mxu0
  %102 = vdwg.mxu0
  %v103 = vadd.f32 %v21, %v89
  %v104 = vadd.f32 %v22, %v92
  %v105 = vadd.f32 %v23, %v97
  %v106 = vadd.f32 %v24, %v100
  %107 = vst.msk [vmem:[#allocation2] sm:$0xff] %vm47, %v103
  %108 = vst.msk [vmem:[#allocation2 + $0x8] sm:$0xff] %vm47, %v104
  %109 = vst.msk [vmem:[#allocation2 + $0x10] sm:$0xff] %vm47, %v105
  %110 = vst.msk [vmem:[#allocation2 + $0x18] sm:$0xff] %vm47, %v106
  // Predicated region
  $region14: #{linear_attention_module.5} parent=0 // pred_check
    %p111 = pneg %p12
  $region15: #{linear_attention_module.5} parent=0 // pred_check_branch
    %113 = sbr.rel (%p111) target = $region17
  $region16: #{linear_attention_module.5} parent=0 // pred_region
    %v114 = vld [vmem:[#allocation2] sm:$0xff]
    %v115 = vld [vmem:[#allocation2 + $0x8] sm:$0xff]
    %v116 = vld [vmem:[#allocation2 + $0x10] sm:$0xff]
    %v117 = vld [vmem:[#allocation2 + $0x18] sm:$0xff]
    %v118 = vpack.c.bf16 %v115, %v114
    %v119 = vpack.c.bf16 %v117, %v116
    %v122 = vunpack.c.l.b16 %v118
    %v123 = vunpack.c.h.b16 %v118
    %v124 = vunpack.c.l.b16 %v119
    %v125 = vunpack.c.h.b16 %v119
    %v126 = vpack.c.b16 %v122, %v122
    %v127 = vpack.c.b16 %v123, %v123
    %v128 = vpack.c.b16 %v124, %v124
    %v129 = vpack.c.b16 %v125, %v125
    %vm134 = vcmask 257024
    %135 = vst.msk [vmem:[%s2] sm:$0xf] %vm134, %v126
    %136 = vst.msk [vmem:[%s2 + $0x4] sm:$0xf] %vm134, %v127
    %137 = vst.msk [vmem:[%s2 + $0x8] sm:$0xf] %vm134, %v128
    %138 = vst.msk [vmem:[%s2 + $0xc] sm:$0xf] %vm134, %v129
  $region17: #{linear_attention_module.5} parent=0 // pred_fallthru
    _
  // Predicated region
  $region18: #{linear_attention_module.5} parent=0 // pred_check
    _
  $region19: #{linear_attention_module.5} parent=0 // pred_check_branch
    %140 = sbr.rel (0) target = $region21
  $region20: #{linear_attention_module.5} parent=0 // pred_region
    _
  $region21: #{linear_attention_module.5} parent=0 // pred_fallthru
    _
  // Predicated region
  $region22: #{linear_attention_module.5} parent=0 // pred_check
    _
  $region23: #{linear_attention_module.5} parent=0 // pred_check_branch
    %142 = sbr.rel (0) target = $region25
  $region24: #{linear_attention_module.5} parent=0 // pred_region
    _
  $region25: #{linear_attention_module.5} parent=0 // pred_fallthru
    _

// kernel: linear_attention_module.6
$region0: #{linear_attention_module.6}
  #allocation0 [shape = 'u32[]', space=smem, size = 0x4, offset = 0x4, fixed_abs, tag = 'smem constant byte address 0x4 - core index']
  #allocation1 [shape = 'u32[144,128]{1,0:T(1,128)}', space=vmem, size = 0x12000, scoped, tag = 'internal scratch']
  #allocation2 [shape = 'f32[32,64]{1,0:T(8,128)}', space=vmem, size = 0x4000, scoped, tag = 'scratch operand']
  %s0 = inlined_call_operand.hbm [shape: f32[32,32], index: 0, kind: input, shape index: {}]
  %s1 = inlined_call_operand.vmem [shape: bf16[32,64], index: 1, kind: input, shape index: {}]
  %s2 = inlined_call_operand.vmem [shape: bf16[32,64], index: 2, kind: output, shape index: {}]
  %s3 = sld [smem:[#allocation0]]
  $region30: #{linear_attention_module.6} parent=0
    _
  %s5 = ssub.s32 1, %s3
  %s6 = scalar_select 0, %s5, %s3
  $region1: #{linear_attention_module.6} parent=0
    #allocation3 [shape = 'u8[16384]{0}', space=vmem, size = 0x4000, scoped, tag = 'input window, operand 0, single buffered']
    #allocation4 [shape = 's32[1]{0}', space=sflag, size = 0x4, scoped, tag = 'scoped memory for linear_attention_module.6']
    %7 = vsyncpa [#allocation4], 0
    // Predicated region
    $region2: #{linear_attention_module.6} parent=1 // pred_check
      _
    $region3: #{linear_attention_module.6} parent=1 // pred_check_branch
      %9 = sbr.rel (0) target = $region5
    $region4: #{linear_attention_module.6} parent=1 // pred_region
      %s11 = ssub.s32 512, 512
      %12 = vsyncadd [#allocation4], %s11
      %s13 = sshll.u32 [#allocation3], 4
      %s14 = int_to_ptr.vmem [resolvable:$true] %s13
      %19 = dma.hbm_to_vmem [thread:$0]  %s0, 512, %s14, [#allocation4], 128, 128, 8
    $region5: #{linear_attention_module.6} parent=1 // pred_fallthru
      _
    // Predicated region
    $region6: #{linear_attention_module.6} parent=1 // pred_check
      _
    $region7: #{linear_attention_module.6} parent=1 // pred_check_branch
      %21 = sbr.rel (0) target = $region9
    $region8: #{linear_attention_module.6} parent=1 // pred_region
      _
    $region9: #{linear_attention_module.6} parent=1 // pred_fallthru
      _
    // Predicated region
    $region10: #{linear_attention_module.6} parent=1 // pred_check
      _
    $region11: #{linear_attention_module.6} parent=1 // pred_check_branch
      %23 = sbr.rel (0) target = $region13
    $region12: #{linear_attention_module.6} parent=1 // pred_region
      %24 = dma.done [#allocation4], 512
    $region13: #{linear_attention_module.6} parent=1 // pred_fallthru
      _
    %p26 = scmp.eq.s32.totalorder 0, 0
    // Predicated region
    $region14: #{linear_attention_module.6} parent=1 // pred_check
      %p27 = pneg %p26
    $region15: #{linear_attention_module.6} parent=1 // pred_check_branch
      %29 = sbr.rel (%p27) target = $region17
    $region16: #{linear_attention_module.6} parent=1 // pred_region
      %vm30 = vcmask 523264
      %31 = vst.msk [vmem:[#allocation2] sm:$0xff] %vm30, 0.0
      %32 = vst.msk [vmem:[#allocation2 + $0x8] sm:$0xff] %vm30, 0.0
      %33 = vst.msk [vmem:[#allocation2 + $0x10] sm:$0xff] %vm30, 0.0
      %34 = vst.msk [vmem:[#allocation2 + $0x18] sm:$0xff] %vm30, 0.0
    $region17: #{linear_attention_module.6} parent=1 // pred_fallthru
      _
    %v35 = vld [vmem:[#allocation2] sm:$0xff]
    %v36 = vld [vmem:[#allocation2 + $0x8] sm:$0xff]
    %v37 = vld [vmem:[#allocation2 + $0x10] sm:$0xff]
    %v38 = vld [vmem:[#allocation2 + $0x18] sm:$0xff]
    %v39 = vld [vmem:[#allocation3] sm:$0xff]
    %v40 = vld [vmem:[#allocation3 + $0x8] sm:$0xff]
    %v41 = vld [vmem:[#allocation3 + $0x10] sm:$0xff]
    %v42 = vld [vmem:[#allocation3 + $0x18] sm:$0xff]
    %v43 = vpack.c.bf16 %v40, %v39
    %v44 = vpack.c.bf16 %v42, %v41
    %v45 = vld [vmem:[%s1] sm:$0xf]
    %v46 = vld [vmem:[%s1 + $0x4] sm:$0xf]
    %v47 = vld [vmem:[%s1 + $0x8] sm:$0xf]
    %v48 = vld [vmem:[%s1 + $0xc] sm:$0xf]
    %v53 = vunpack.c.l.b16 %v45
    %v54 = vunpack.c.l.b16 %v46
    %v55 = vunpack.c.l.b16 %v47
    %v56 = vunpack.c.l.b16 %v48
    %v57 = vpack.c.b16 %v54, %v53
    %v58 = vpack.c.b16 %v56, %v55
    %vm61 = vcmask 261120
    %v63 = vsel %vm61, %v43, 0
    %v66 = vsel %vm61, %v44, 0
    %68 = vmatprep.subr.bf16.mxu0 0
    %69 = vmatpush1.bf16.msra.mxu0 %v57
    %70 = vmatprep.subr.bf16.mxu0 0
    %71 = vmatpush1.bf16.msra.mxu0 %v58
    %72 = vmatprep.subr.bf16.mxu0 0
    %73 = vmatpush1.bf16.msra.mxu0 0
    %74 = vmatprep.subr.bf16.mxu0 0
    %75 = vmatpush1.bf16.msra.mxu0 0
    %76 = vmatprep.subr.bf16.mxu0 0
    %77 = vmatpush1.bf16.msra.mxu0 0
    %78 = vmatprep.subr.bf16.mxu0 0
    %79 = vmatpush1.bf16.msra.mxu0 0
    %80 = vmatprep.subr.bf16.mxu0 0
    %81 = vmatpush1.bf16.msra.mxu0 0
    %82 = vmatprep.subr.bf16.mxu0 0
    %83 = vmatpush1.bf16.msra.mxu0 0
    %84 = vmatprep.subr.bf16.mxu0 0
    %85 = vmatpush1.bf16.msra.mxu0 0
    %86 = vmatprep.subr.bf16.mxu0 0
    %87 = vmatpush1.bf16.msra.mxu0 0
    %88 = vmatprep.subr.bf16.mxu0 0
    %89 = vmatpush1.bf16.msra.mxu0 0
    %90 = vmatprep.subr.bf16.mxu0 0
    %91 = vmatpush1.bf16.msra.mxu0 0
    %92 = vmatprep.subr.bf16.mxu0 0
    %93 = vmatpush1.bf16.msra.mxu0 0
    %94 = vmatprep.subr.bf16.mxu0 0
    %95 = vmatpush1.bf16.msra.mxu0 0
    %96 = vmatprep.subr.bf16.mxu0 0
    %97 = vmatpush1.bf16.msra.mxu0 0
    %98 = vmatprep.subr.bf16.mxu0 0
    %99 = vmatpush1.bf16.msra.mxu0 0
    %100 = vmatprep.mubr.bf16.mxu0 0
    %101 = vmatmul.mubr.bf16.gmra.mrb[0].mxu0 %v63
    %v102 = vpop.f32.mrb[0].mxu0
    %v103 = vadd.f32 0.0, %v102
    %v104 = vpop.f32.mrb[0].mxu0
    %v105 = vpop.f32.mrb[0].mxu0
    %v106 = vadd.f32 0.0, %v105
    %v107 = vpop.f32.mrb[0].mxu0
    %108 = vmatprep.mubr.bf16.mxu0 0
    %109 = vmatmul.mubr.bf16.gmra.mrb[0].mxu0 %v66
    %v110 = vpop.f32.mrb[0].mxu0
    %v111 = vadd.f32 0.0, %v110
    %v112 = vpop.f32.mrb[0].mxu0
    %v113 = vpop.f32.mrb[0].mxu0
    %v114 = vadd.f32 0.0, %v113
    %v115 = vpop.f32.mrb[0].mxu0
    %116 = vdwg.mxu0
    %v117 = vadd.f32 %v35, %v103
    %v118 = vadd.f32 %v36, %v106
    %v119 = vadd.f32 %v37, %v111
    %v120 = vadd.f32 %v38, %v114
    %vm121 = vcmask 523264
    %122 = vst.msk [vmem:[#allocation2] sm:$0xff] %vm121, %v117
    %123 = vst.msk [vmem:[#allocation2 + $0x8] sm:$0xff] %vm121, %v118
    %124 = vst.msk [vmem:[#allocation2 + $0x10] sm:$0xff] %vm121, %v119
    %125 = vst.msk [vmem:[#allocation2 + $0x18] sm:$0xff] %vm121, %v120
    // Predicated region
    $region18: #{linear_attention_module.6} parent=1 // pred_check
      %p126 = pneg %p26
    $region19: #{linear_attention_module.6} parent=1 // pred_check_branch
      %128 = sbr.rel (%p126) target = $region21
    $region20: #{linear_attention_module.6} parent=1 // pred_region
      %v129 = vld [vmem:[#allocation2] sm:$0xff]
      %v130 = vld [vmem:[#allocation2 + $0x8] sm:$0xff]
      %v131 = vld [vmem:[#allocation2 + $0x10] sm:$0xff]
      %v132 = vld [vmem:[#allocation2 + $0x18] sm:$0xff]
      %v133 = vpack.c.bf16 %v130, %v129
      %v134 = vpack.c.bf16 %v132, %v131
      %v137 = vunpack.c.l.b16 %v133
      %v138 = vunpack.c.h.b16 %v133
      %v139 = vunpack.c.l.b16 %v134
      %v140 = vunpack.c.h.b16 %v134
      %v141 = vpack.c.b16 %v137, %v137
      %v142 = vpack.c.b16 %v138, %v138
      %v143 = vpack.c.b16 %v139, %v139
      %v144 = vpack.c.b16 %v140, %v140
      %vm149 = vcmask 519168
      %150 = vst.msk [vmem:[%s2] sm:$0xf] %vm149, %v141
      %151 = vst.msk [vmem:[%s2 + $0x4] sm:$0xf] %vm149, %v142
      %152 = vst.msk [vmem:[%s2 + $0x8] sm:$0xf] %vm149, %v143
      %153 = vst.msk [vmem:[%s2 + $0xc] sm:$0xf] %vm149, %v144
    $region21: #{linear_attention_module.6} parent=1 // pred_fallthru
      _
    // Predicated region
    $region22: #{linear_attention_module.6} parent=1 // pred_check
      _
    $region23: #{linear_attention_module.6} parent=1 // pred_check_branch
      %155 = sbr.rel (0) target = $region25
    $region24: #{linear_attention_module.6} parent=1 // pred_region
      _
    $region25: #{linear_attention_module.6} parent=1 // pred_fallthru
      _
    // Predicated region
    $region26: #{linear_attention_module.6} parent=1 // pred_check
      _
    $region27: #{linear_attention_module.6} parent=1 // pred_check_branch
      %157 = sbr.rel (0) target = $region29
    $region28: #{linear_attention_module.6} parent=1 // pred_region
      _
    $region29: #{linear_attention_module.6} parent=1 // pred_fallthru
      _
    %158 = vsyncpa [#allocation4], 1

// kernel: linear_attention_module.9
$region0: #{linear_attention_module.9}
  #allocation0 [shape = 'u32[]', space=smem, size = 0x4, offset = 0x4, fixed_abs, tag = 'smem constant byte address 0x4 - core index']
  #allocation1 [shape = 'u32[144,128]{1,0:T(1,128)}', space=vmem, size = 0x12000, scoped, tag = 'internal scratch']
  %s0 = inlined_call_operand.vmem [shape: bf16[32,32], index: 0, kind: input, shape index: {}]
  %s1 = inlined_call_operand.vmem [shape: bf16[32,32], index: 1, kind: input, shape index: {}]
  %s2 = inlined_call_operand.vmem [shape: f32[1,32], index: 2, kind: input, shape index: {}]
  %s3 = inlined_call_operand.hbm [shape: f32[32,32], index: 3, kind: output, shape index: {}]
  %s4 = sld [smem:[#allocation0]]
  $region30: #{linear_attention_module.9} parent=0
    _
  %s6 = ssub.s32 1, %s4
  %s7 = scalar_select 0, %s6, %s4
  $region1: #{linear_attention_module.9} parent=0
    #allocation2 [shape = 'u8[16384]{0}', space=vmem, size = 0x4000, scoped, tag = 'output window, operand 0, single buffered']
    #allocation3 [shape = 's32[1]{0}', space=sflag, size = 0x4, scoped, tag = 'scoped memory for linear_attention_module.9']
    %8 = vsyncpa [#allocation3], 0
    // Predicated region
    $region2: #{linear_attention_module.9} parent=1 // pred_check
      _
    $region3: #{linear_attention_module.9} parent=1 // pred_check_branch
      %10 = sbr.rel (0) target = $region5
    $region4: #{linear_attention_module.9} parent=1 // pred_region
      _
    $region5: #{linear_attention_module.9} parent=1 // pred_fallthru
      _
    // Predicated region
    $region6: #{linear_attention_module.9} parent=1 // pred_check
      _
    $region7: #{linear_attention_module.9} parent=1 // pred_check_branch
      %12 = sbr.rel (0) target = $region9
    $region8: #{linear_attention_module.9} parent=1 // pred_region
      _
    $region9: #{linear_attention_module.9} parent=1 // pred_fallthru
      _
    // Predicated region
    $region10: #{linear_attention_module.9} parent=1 // pred_check
      _
    $region11: #{linear_attention_module.9} parent=1 // pred_check_branch
      %14 = sbr.rel (0) target = $region13
    $region12: #{linear_attention_module.9} parent=1 // pred_region
      _
    $region13: #{linear_attention_module.9} parent=1 // pred_fallthru
      _
    %p16 = scmp.eq.s32.totalorder 0, 0
    // Predicated region
    $region14: #{linear_attention_module.9} parent=1 // pred_check
      %p17 = pneg %p16
    $region15: #{linear_attention_module.9} parent=1 // pred_check_branch
      %19 = sbr.rel (%p17) target = $region17
    $region16: #{linear_attention_module.9} parent=1 // pred_region
      %vm20 = vcmask 261120
      %21 = vst.msk [vmem:[#allocation2] sm:$0xff] %vm20, 0.0
      %22 = vst.msk [vmem:[#allocation2 + $0x8] sm:$0xff] %vm20, 0.0
      %23 = vst.msk [vmem:[#allocation2 + $0x10] sm:$0xff] %vm20, 0.0
      %24 = vst.msk [vmem:[#allocation2 + $0x18] sm:$0xff] %vm20, 0.0
    $region17: #{linear_attention_module.9} parent=1 // pred_fallthru
      _
    %v25 = vld [vmem:[#allocation2] sm:$0xff]
    %v26 = vld [vmem:[#allocation2 + $0x8] sm:$0xff]
    %v27 = vld [vmem:[#allocation2 + $0x10] sm:$0xff]
    %v28 = vld [vmem:[#allocation2 + $0x18] sm:$0xff]
    %v29 = vld [vmem:[%s0] sm:$0xf]
    %v30 = vld [vmem:[%s0 + $0x4] sm:$0xf]
    %v31 = vld [vmem:[%s0 + $0x8] sm:$0xf]
    %v32 = vld [vmem:[%s0 + $0xc] sm:$0xf]
    %v33 = vld [vmem:[%s1] sm:$0xf]
    %v34 = vld [vmem:[%s1 + $0x4] sm:$0xf]
    %v35 = vld [vmem:[%s1 + $0x8] sm:$0xf]
    %v36 = vld [vmem:[%s1 + $0xc] sm:$0xf]
    %v41 = vunpack.c.l.b16 %v29
    %v42 = vunpack.c.l.b16 %v30
    %v43 = vunpack.c.l.b16 %v31
    %v44 = vunpack.c.l.b16 %v32
    %v45 = vpack.c.b16 %v42, %v41
    %v46 = vpack.c.b16 %v44, %v43
    %v51 = vunpack.c.l.b16 %v33
    %v52 = vunpack.c.l.b16 %v34
    %v53 = vunpack.c.l.b16 %v35
    %v54 = vunpack.c.l.b16 %v36
    %v55 = vpack.c.b16 %v52, %v51
    %v56 = vpack.c.b16 %v54, %v53
    %vm59 = vcmask 261120
    %v61 = vsel %vm59, %v45, 0
    %v64 = vsel %vm59, %v46, 0
    %66 = vmatprep.subr.bf16.mxu0 0
    %67 = vmatpush1.bf16.msra.mxu0 %v55
    %68 = vmatprep.subr.bf16.mxu0 0
    %69 = vmatpush1.bf16.msra.mxu0 %v56
    %70 = vmatprep.subr.bf16.mxu0 0
    %71 = vmatpush1.bf16.msra.mxu0 0
    %72 = vmatprep.subr.bf16.mxu0 0
    %73 = vmatpush1.bf16.msra.mxu0 0
    %74 = vmatprep.subr.bf16.mxu0 0
    %75 = vmatpush1.bf16.msra.mxu0 0
    %76 = vmatprep.subr.bf16.mxu0 0
    %77 = vmatpush1.bf16.msra.mxu0 0
    %78 = vmatprep.subr.bf16.mxu0 0
    %79 = vmatpush1.bf16.msra.mxu0 0
    %80 = vmatprep.subr.bf16.mxu0 0
    %81 = vmatpush1.bf16.msra.mxu0 0
    %82 = vmatprep.subr.bf16.mxu0 0
    %83 = vmatpush1.bf16.msra.mxu0 0
    %84 = vmatprep.subr.bf16.mxu0 0
    %85 = vmatpush1.bf16.msra.mxu0 0
    %86 = vmatprep.subr.bf16.mxu0 0
    %87 = vmatpush1.bf16.msra.mxu0 0
    %88 = vmatprep.subr.bf16.mxu0 0
    %89 = vmatpush1.bf16.msra.mxu0 0
    %90 = vmatprep.subr.bf16.mxu0 0
    %91 = vmatpush1.bf16.msra.mxu0 0
    %92 = vmatprep.subr.bf16.mxu0 0
    %93 = vmatpush1.bf16.msra.mxu0 0
    %94 = vmatprep.subr.bf16.mxu0 0
    %95 = vmatpush1.bf16.msra.mxu0 0
    %96 = vmatprep.subr.bf16.mxu0 0
    %97 = vmatpush1.bf16.msra.mxu0 0
    %98 = vmatprep.mubr.bf16.mxu0 0
    %99 = vmatmul.mubr.bf16.gmra.mrb[0].mxu0 %v61
    %v100 = vpop.f32.mrb[0].mxu0
    %v101 = vadd.f32 0.0, %v100
    %v102 = vpop.f32.mrb[0].mxu0
    %v103 = vpop.f32.mrb[0].mxu0
    %v104 = vadd.f32 0.0, %v103
    %v105 = vpop.f32.mrb[0].mxu0
    %106 = vmatprep.mubr.bf16.mxu0 0
    %107 = vmatmul.mubr.bf16.gmra.mrb[0].mxu0 %v64
    %v108 = vpop.f32.mrb[0].mxu0
    %v109 = vadd.f32 0.0, %v108
    %v110 = vpop.f32.mrb[0].mxu0
    %v111 = vpop.f32.mrb[0].mxu0
    %v112 = vadd.f32 0.0, %v111
    %v113 = vpop.f32.mrb[0].mxu0
    %114 = vdwg.mxu0
    %v115 = vadd.f32 %v25, %v101
    %v116 = vadd.f32 %v26, %v104
    %v117 = vadd.f32 %v27, %v109
    %v118 = vadd.f32 %v28, %v112
    %119 = vst.msk [vmem:[#allocation2] sm:$0xff] %vm59, %v115
    %120 = vst.msk [vmem:[#allocation2 + $0x8] sm:$0xff] %vm59, %v116
    %121 = vst.msk [vmem:[#allocation2 + $0x10] sm:$0xff] %vm59, %v117
    %122 = vst.msk [vmem:[#allocation2 + $0x18] sm:$0xff] %vm59, %v118
    // Predicated region
    $region18: #{linear_attention_module.9} parent=1 // pred_check
      %p123 = pneg %p16
    $region19: #{linear_attention_module.9} parent=1 // pred_check_branch
      %125 = sbr.rel (%p123) target = $region21
    $region20: #{linear_attention_module.9} parent=1 // pred_region
      %v126 = vld [vmem:[#allocation2] sm:$0xff]
      %v127 = vld [vmem:[#allocation2 + $0x8] sm:$0xff]
      %v128 = vld [vmem:[#allocation2 + $0x10] sm:$0xff]
      %v129 = vld [vmem:[#allocation2 + $0x18] sm:$0xff]
      %v130 = vld [vmem:[%s2] sm:$0x1]
      %v132 = vlaneseq
      %v133 = vshrl.u32 %v132, 7
      %v134 = vsub.s32 0, %v133
      %v135 = vrot.slane %v130, %v134
      %v137 = vadd.f32 %v126, %v135
      %v138 = vadd.f32 %v127, %v135
      %v139 = vadd.f32 %v128, %v135
      %v140 = vadd.f32 %v129, %v135
      %141 = vst.msk [vmem:[#allocation2] sm:$0xff] %vm59, %v137
      %142 = vst.msk [vmem:[#allocation2 + $0x8] sm:$0xff] %vm59, %v138
      %143 = vst.msk [vmem:[#allocation2 + $0x10] sm:$0xff] %vm59, %v139
      %144 = vst.msk [vmem:[#allocation2 + $0x18] sm:$0xff] %vm59, %v140
    $region21: #{linear_attention_module.9} parent=1 // pred_fallthru
      _
    // Predicated region
    $region22: #{linear_attention_module.9} parent=1 // pred_check
      _
    $region23: #{linear_attention_module.9} parent=1 // pred_check_branch
      %146 = sbr.rel (0) target = $region25
    $region24: #{linear_attention_module.9} parent=1 // pred_region
      %s148 = ssub.s32 512, 512
      %149 = vsyncadd [#allocation3], %s148
      %s150 = sshll.u32 [#allocation2], 4
      %s151 = int_to_ptr.vmem [resolvable:$true] %s150
      %156 = dma.vmem_to_hbm [thread:$0]  %s151, 512, %s3, [#allocation3], 128, 128, 8
    $region25: #{linear_attention_module.9} parent=1 // pred_fallthru
      _
    // Predicated region
    $region26: #{linear_attention_module.9} parent=1 // pred_check
      _
    $region27: #{linear_attention_module.9} parent=1 // pred_check_branch
      %158 = sbr.rel (0) target = $region29
    $region28: #{linear_attention_module.9} parent=1 // pred_region
      %159 = dma.done [#allocation3], 512
    $region29: #{linear_attention_module.9} parent=1 // pred_fallthru
      _
    %160 = vsyncpa [#allocation3], 1

</llo_original>
